<compile_context>
chip_gen: v7x
topology: tpu7x:2x2x1
jax: 0.10.0
libtpu: 0.0.40
codegen_flags: <defaults>
</compile_context>

<pallas_src>
import functools

import jax
import jax.numpy as jnp
from jax import lax
from jax.experimental import pallas as pl
from jax.experimental.pallas import tpu as pltpu

E = 300                       # embedding dim (fixed by module: conv width 300)
C_OUT = 100                   # conv out-channels per kernel size
C_PAD = 128                   # Cout padded to a full lane register
KSIZES = (3, 4, 5)
NUM_TAPS = sum(KSIZES)        # 12
WCOLS = NUM_TAPS * C_PAD      # 1536 columns in the fused conv weight
FEAT = len(KSIZES) * C_PAD    # 384 pooled features (padded)
NUM_CLASSES = 2
OUT_PAD = 128                 # classifier output padded to a full lane register


def textcnn_kernel(emb_ref, wall_ref, ball_ref, lw_ref, lb_ref, out_ref,
                   *, L_orig, L_pad):
    tb = out_ref.shape[0]                 # batch tile

    # One fused MXU matmul for all 12 conv taps: (TB*L_pad, Kp) @ (Kp, 1536).
    prods = jnp.dot(emb_ref[...], wall_ref[...],
                    preferred_element_type=jnp.float32)
    prods = prods.reshape(tb, L_pad, WCOLS)   # L_pad % 8 == 0 -> aligned split

    # Vectorized conv + global max-pool per kernel size (bias hoisted out of
    # the time loop: max_t relu(y_t + b) == relu(max_t y_t + b)).  Only the
    # L_orig - k + 1 valid positions are reduced, so zero-padded time rows
    # never reach the max.
    pooled_parts = []
    tap = 0
    for k in KSIZES:
        valid = L_orig - k + 1
        acc = prods[:, 0:valid, tap * C_PAD:(tap + 1) * C_PAD]
        for dh in range(1, k):
            c0 = (tap + dh) * C_PAD
            acc = acc + prods[:, dh:dh + valid, c0:c0 + C_PAD]
        pooled_parts.append(jnp.max(acc, axis=1))        # (TB, 128)
        tap += k

    pooled = jnp.concatenate(pooled_parts, axis=1)       # (TB, 384), f32
    feat = jnp.maximum(pooled + ball_ref[...], 0.0)      # bias + relu (once)

    # TODO(synk): dropout(p=0.5) implemented as eval-mode identity (no RNG masking).
    logits = jnp.dot(feat, lw_ref[...],
                     preferred_element_type=jnp.float32) + lb_ref[...]  # (TB,128)

    # Lane-dense softmax: mask the 126 pad columns with a large negative value
    # so they contribute 0 to the denominator and 0 to the output.
    col = lax.broadcasted_iota(jnp.int32, logits.shape, 1)
    logits = jnp.where(col < NUM_CLASSES, logits, jnp.float32(-1e30))
    m = jnp.max(logits, axis=1, keepdims=True)
    e = jnp.exp(logits - m)
    denom = jnp.sum(e, axis=1, keepdims=True)
    out_ref[...] = e * pl.reciprocal(denom, approx=True)


def _prep_weights(params, dtype, share):
    """Fuse/pad conv + linear weights to the lane-dense kernel layout."""
    w_cols, b_cols, lw_rows = [], [], []
    lwT = params["lin_w"].T.astype(jnp.float32)           # (300, 2)
    for ki, k in enumerate(KSIZES):
        w = params[f"conv{k}_w"]                          # (Cout, 2, k, E) OIHW
        # -> (k, 2E, Cout): channel-major matches emb_cat = concat([e1, e2], -1)
        wr = jnp.transpose(w, (2, 1, 3, 0)).reshape(k, 2 * E, C_OUT)
        wr = jnp.pad(wr, ((0, 0), (0, 0), (0, C_PAD - C_OUT)))     # Cout 100->128
        # -> (2E, k*C_PAD): tap-major column blocks
        wk = jnp.transpose(wr, (1, 0, 2)).reshape(2 * E, k * C_PAD)
        if share:
            wk = wk[:E] + wk[E:]          # identical tables -> fold channels
        w_cols.append(wk)
        b_cols.append(jnp.pad(params[f"conv{k}_b"], (0, C_PAD - C_OUT)))
        lw_rows.append(jnp.pad(lwT[ki * C_OUT:(ki + 1) * C_OUT],
                               ((0, C_PAD - C_OUT), (0, 0))))      # zero rows
    k_raw = E if share else 2 * E
    k_pad = -(-k_raw // 128) * 128                        # 384 or 640 (lane-dense K)
    w_all = jnp.concatenate(w_cols, axis=1)               # (k_raw, 1536)
    w_all = jnp.pad(w_all, ((0, k_pad - k_raw), (0, 0))).astype(dtype)
    b_all = jnp.concatenate(b_cols).reshape(1, FEAT).astype(jnp.float32)
    lw_pad = jnp.concatenate(lw_rows, axis=0)             # (384, 2)
    lw_pad = jnp.pad(lw_pad, ((0, 0), (0, OUT_PAD - NUM_CLASSES))).astype(jnp.float32)
    lb = jnp.pad(params["lin_b"], (0, OUT_PAD - NUM_CLASSES))
    lb = lb.reshape(1, OUT_PAD).astype(jnp.float32)
    return w_all, b_all, lw_pad, lb, k_pad, k_raw


def prep_textcnn(params, dtype=jnp.bfloat16):
    """One-time weight fusion/padding + embedding-table dtype cast."""
    share = params["emb1"] is params["emb2"]              # from_pretrained copy
    w_all, b_all, lw, lb, k_pad, k_raw = _prep_weights(params, dtype, share)
    prepped = {
        "share": share, "dtype": dtype, "k_pad": k_pad, "k_raw": k_raw,
        "w_all": w_all, "b_all": b_all, "lw": lw, "lb": lb,
        "emb_t1": params["emb1"].astype(dtype),
    }
    if not share:
        prepped["emb_t2"] = params["emb2"].astype(dtype)
    return prepped


def _vmem_limit_bytes():
    """Per-generation VMEM plan: ~3/4 of reported capacity, capped at 96 MiB
    (v5e/v6e: 128 MiB physical), with a 48 MiB fallback that is safe on
    v7x's 64 MiB-per-TC."""
    cap = None
    try:
        info = pltpu.get_tpu_info()
        cap = getattr(info, "vmem_capacity_bytes", None)
    except Exception:
        cap = None
    if not cap or cap <= 0:
        cap = 64 << 20
    cap = min(int(cap), 128 << 20)
    return min(cap * 3 // 4, 96 << 20)


def _choose_batch_tile(B, L_pad, k_pad, dt_bytes, vmem_limit):
    """Largest batch tile that (a) divides B, (b) keeps the (8,128) block rules
    happy (TB % 8 == 0 or TB == B), and (c) fits the full per-step VMEM model
    (double-buffered emb tile + f32 fused product + tap accumulators) inside
    ~80% of vmem_limit after the single-buffered resident weights.  Among
    fitting tiles, prefer ones giving >= 2 grid steps so both v7x TensorCores
    get work from the 'parallel' grid axis."""
    fixed = (k_pad * WCOLS * dt_bytes          # w_all   (Buffered(1))
             + FEAT * 4                        # b_all
             + FEAT * OUT_PAD * 4              # lw
             + OUT_PAD * 4)                    # lb
    per_row = (2 * L_pad * k_pad * dt_bytes    # emb tile (double-buffered)
               + L_pad * WCOLS * 4             # f32 fused product
               + 3 * L_pad * C_PAD * 4         # tap accumulators / staging
               + 2 * OUT_PAD * 4)              # output tile (double-buffered)
    budget = int(vmem_limit * 0.80) - fixed
    cands = [tb for tb in range(1, B + 1)
             if B % tb == 0 and (tb == B or tb % 8 == 0)]
    fitting = [tb for tb in cands if tb * per_row <= budget] or cands[:1]
    multi = [tb for tb in fitting if B // tb >= 2]
    return max(multi if multi else fitting)


def textcnn_forward(x, prepped):
    B, L = x.shape
    assert L >= max(KSIZES), "sequence length must be >= largest conv kernel (5)"
    dtype = prepped["dtype"]
    k_pad, k_raw = prepped["k_pad"], prepped["k_raw"]
    L_pad = -(-L // 8) * 8                                 # time axis -> mult of 8

    # Embedding gather (glue, plain JAX) already in the kernel dtype; pad time
    # and contraction dims with zeros (ignored / multiplied by zero weights).
    if prepped["share"]:
        emb = prepped["emb_t1"][x]                         # (B, L, 300)
    else:
        emb = jnp.concatenate([prepped["emb_t1"][x], prepped["emb_t2"][x]],
                              axis=-1)                     # (B, L, 600)
    emb = jnp.pad(emb, ((0, 0), (0, L_pad - L), (0, k_pad - k_raw)))
    emb_flat = emb.reshape(B * L_pad, k_pad)

    vmem_limit = _vmem_limit_bytes()
    TB = _choose_batch_tile(B, L_pad, k_pad, jnp.dtype(dtype).itemsize, vmem_limit)
    grid = (B // TB,)

    kernel = functools.partial(textcnn_kernel, L_orig=L, L_pad=L_pad)
    resident = dict(pipeline_mode=pl.Buffered(1))          # constant index_map

    cost = pl.CostEstimate(
        flops=2 * B * L_pad * k_pad * WCOLS + 2 * B * FEAT * OUT_PAD,
        transcendentals=B * OUT_PAD,
        bytes_accessed=(emb_flat.size * emb_flat.dtype.itemsize
                        + prepped["w_all"].size * prepped["w_all"].dtype.itemsize
                        + FEAT * OUT_PAD * 4
                        + B * OUT_PAD * 4))

    out = pl.pallas_call(
        kernel,
        out_shape=jax.ShapeDtypeStruct((B, OUT_PAD), jnp.float32),
        grid_spec=pltpu.PrefetchScalarGridSpec(
            num_scalar_prefetch=0,
            grid=grid,
            in_specs=[
                pl.BlockSpec((TB * L_pad, k_pad), lambda i: (i, 0)),         # streamed
                pl.BlockSpec((k_pad, WCOLS), lambda i: (0, 0), **resident),  # resident
                pl.BlockSpec((1, FEAT), lambda i: (0, 0), **resident),       # resident
                pl.BlockSpec((FEAT, OUT_PAD), lambda i: (0, 0), **resident), # resident
                pl.BlockSpec((1, OUT_PAD), lambda i: (0, 0), **resident),    # resident
            ],
            out_specs=pl.BlockSpec((TB, OUT_PAD), lambda i: (i, 0)),
        ),
        compiler_params=pltpu.CompilerParams(
            dimension_semantics=("parallel",),
            vmem_limit_bytes=vmem_limit),
        cost_estimate=cost,
    )(emb_flat, prepped["w_all"], prepped["b_all"], prepped["lw"], prepped["lb"])
    return out[:, :NUM_CLASSES]


def textcnn_reference(x, params):
    """Pure-JAX reference mirroring the PyTorch forward (NCHW convs)."""
    embeds1 = params["emb1"][x]
    embeds2 = params["emb2"][x]
    embeds = jnp.stack([embeds1, embeds2], axis=1)        # (B, 2, L, E)  NCHW
    feats = []
    for k in KSIZES:
        w = params[f"conv{k}_w"]                          # (Cout, 2, k, E) OIHW
        b = params[f"conv{k}_b"]
        y = lax.conv_general_dilated(
            embeds, w, window_strides=(1, 1), padding="VALID",
            dimension_numbers=("NCHW", "OIHW", "NCHW"))   # (B, Cout, L-k+1, 1)
        y = y + b[None, :, None, None]
        y = jnp.maximum(y, 0.0)[..., 0]                   # (B, Cout, L-k+1)
        feats.append(jnp.max(y, axis=2))                  # (B, Cout)
    feat = jnp.concatenate(feats, axis=1)                 # (B, 300)
    logits = feat @ params["lin_w"].T + params["lin_b"]
    return jax.nn.softmax(logits, axis=1)


def init_params(key, vocab_size):
    ks = jax.random.split(key, 6)
    word_embedding = jax.random.normal(ks[0], (vocab_size, E), jnp.float32) * 0.1
    params = {
        # nn.Embedding.from_pretrained: both tables start from the same matrix.
        "emb1": word_embedding,
        "emb2": word_embedding,
        "lin_w": jax.random.normal(ks[1], (NUM_CLASSES, 3 * C_OUT), jnp.float32) * 0.05,
        "lin_b": jax.random.normal(ks[2], (NUM_CLASSES,), jnp.float32) * 0.01,
    }
    for i, k in enumerate(KSIZES):
        params[f"conv{k}_w"] = jax.random.normal(
            ks[3 + i], (C_OUT, 2, k, E), jnp.float32) * 0.05
        params[f"conv{k}_b"] = jnp.zeros((C_OUT,), jnp.float32) + 0.01 * (i + 1)
    return params


if __name__ == "__main__":
    key = jax.random.PRNGKey(0)
    k_param, k_x, k_x2, k_noise = jax.random.split(key, 4)

    VOCAB = 50
    B, L = 2, 8                                  # batch=2, seq_len=8
    params = init_params(k_param, VOCAB)
    x = jax.random.randint(k_x, (B, L), 0, VOCAB, dtype=jnp.int32)
    ref = jax.block_until_ready(textcnn_reference(x, params))

    # 1) Default path: bf16 operands, shared-table fast path (K=300->384), f32 accum.
    prepped_bf16 = prep_textcnn(params)
    out = jax.block_until_ready(textcnn_forward(x, prepped_bf16))
    assert out.shape == (B, NUM_CLASSES)
    assert jnp.allclose(out, ref, rtol=5e-2, atol=5e-2), (out, ref)

    # 2) f32 path (tight tolerance check).
    prepped_f32 = prep_textcnn(params, dtype=jnp.float32)
    out_f32 = jax.block_until_ready(textcnn_forward(x, prepped_f32))
    assert jnp.allclose(out_f32, ref, rtol=2e-3, atol=2e-3), (out_f32, ref)

    # 3) Distinct-table path (2-channel K=600->640) + non-multiple-of-8 seq len
    #    (exercises time padding), f32.
    params_2t = dict(params)
    params_2t["emb2"] = params["emb2"] + 0.05 * jax.random.normal(
        k_noise, params["emb2"].shape, jnp.float32)
    L2 = 11
    x2 = jax.random.randint(k_x2, (B, L2), 0, VOCAB, dtype=jnp.int32)
    ref_2t = jax.block_until_ready(textcnn_reference(x2, params_2t))
    out_2t = jax.block_until_ready(
        textcnn_forward(x2, prep_textcnn(params_2t, dtype=jnp.float32)))
    assert jnp.allclose(out_2t, ref_2t, rtol=2e-3, atol=2e-3), (out_2t, ref_2t)

    print("KERNEL_OK")
</pallas_src>

<mosaic_0001>
module attributes {stable_mosaic.version = 11 : i64} {
  func.func @textcnn_kernel(%arg0: i32, %arg1: memref<16x384xbf16, #tpu.memory_space<vmem>>, %arg2: memref<384x1536xbf16, #tpu.memory_space<vmem>>, %arg3: memref<1x384xf32, #tpu.memory_space<vmem>>, %arg4: memref<384x128xf32, #tpu.memory_space<vmem>>, %arg5: memref<1x128xf32, #tpu.memory_space<vmem>>, %arg6: memref<2x128xf32, #tpu.memory_space<vmem>>) attributes {dimension_semantics = [#tpu.dimension_semantics<parallel>], iteration_bounds = array<i64: 1>, scalar_prefetch = 0 : i64, scratch_operands = 0 : i64, tpu.core_type = #tpu.core_type<tc>, window_params = [{transform_indices = @transform_0, window_bounds = array<i64: 16, 384>}, {pipeline_mode = #tpu.pipeline_mode<synchronous>, transform_indices = @transform_1, window_bounds = array<i64: 384, 1536>}, {pipeline_mode = #tpu.pipeline_mode<synchronous>, transform_indices = @transform_2, window_bounds = array<i64: 1, 384>}, {pipeline_mode = #tpu.pipeline_mode<synchronous>, transform_indices = @transform_3, window_bounds = array<i64: 384, 128>}, {pipeline_mode = #tpu.pipeline_mode<synchronous>, transform_indices = @transform_4, window_bounds = array<i64: 1, 128>}, {transform_indices = @transform_5, window_bounds = array<i64: 2, 128>}]} {
    %c0 = arith.constant 0 : index
    %c0_0 = arith.constant 0 : index
    %0 = vector.load %arg1[%c0, %c0_0] : memref<16x384xbf16, #tpu.memory_space<vmem>>, vector<16x384xbf16>
    %c0_1 = arith.constant 0 : index
    %c0_2 = arith.constant 0 : index
    %1 = vector.load %arg2[%c0_1, %c0_2] : memref<384x1536xbf16, #tpu.memory_space<vmem>>, vector<384x1536xbf16>
    %cst = arith.constant dense<0.000000e+00> : vector<16x1536xf32>
    %2 = tpu.matmul %0, %1, %cst {dimension_numbers = #tpu.dot_dimension_numbers<[1], [0], [0], [1], [0, 0, 1, 1], [], []>} : vector<16x384xbf16>, vector<384x1536xbf16>, vector<16x1536xf32> -> vector<16x1536xf32>
    %3 = vector.shape_cast %2 : vector<16x1536xf32> to vector<2x8x1536xf32>
    %4 = vector.extract_strided_slice %3 {offsets = [0, 0, 0], sizes = [2, 6, 128], strides = [1, 1, 1]} : vector<2x8x1536xf32> to vector<2x6x128xf32>
    %5 = vector.extract_strided_slice %3 {offsets = [0, 1, 128], sizes = [2, 6, 128], strides = [1, 1, 1]} : vector<2x8x1536xf32> to vector<2x6x128xf32>
    %6 = arith.addf %4, %5 : vector<2x6x128xf32>
    %7 = vector.extract_strided_slice %3 {offsets = [0, 2, 256], sizes = [2, 6, 128], strides = [1, 1, 1]} : vector<2x8x1536xf32> to vector<2x6x128xf32>
    %8 = arith.addf %6, %7 : vector<2x6x128xf32>
    %cst_3 = arith.constant dense<0xFF800000> : vector<2x128xf32>
    %9 = vector.multi_reduction <maximumf>, %8, %cst_3 [1] : vector<2x6x128xf32> to vector<2x128xf32>
    %10 = vector.extract_strided_slice %3 {offsets = [0, 0, 384], sizes = [2, 5, 128], strides = [1, 1, 1]} : vector<2x8x1536xf32> to vector<2x5x128xf32>
    %11 = vector.extract_strided_slice %3 {offsets = [0, 1, 512], sizes = [2, 5, 128], strides = [1, 1, 1]} : vector<2x8x1536xf32> to vector<2x5x128xf32>
    %12 = arith.addf %10, %11 : vector<2x5x128xf32>
    %13 = vector.extract_strided_slice %3 {offsets = [0, 2, 640], sizes = [2, 5, 128], strides = [1, 1, 1]} : vector<2x8x1536xf32> to vector<2x5x128xf32>
    %14 = arith.addf %12, %13 : vector<2x5x128xf32>
    %15 = vector.extract_strided_slice %3 {offsets = [0, 3, 768], sizes = [2, 5, 128], strides = [1, 1, 1]} : vector<2x8x1536xf32> to vector<2x5x128xf32>
    %16 = arith.addf %14, %15 : vector<2x5x128xf32>
    %cst_4 = arith.constant dense<0xFF800000> : vector<2x128xf32>
    %17 = vector.multi_reduction <maximumf>, %16, %cst_4 [1] : vector<2x5x128xf32> to vector<2x128xf32>
    %18 = vector.extract_strided_slice %3 {offsets = [0, 0, 896], sizes = [2, 4, 128], strides = [1, 1, 1]} : vector<2x8x1536xf32> to vector<2x4x128xf32>
    %19 = vector.extract_strided_slice %3 {offsets = [0, 1, 1024], sizes = [2, 4, 128], strides = [1, 1, 1]} : vector<2x8x1536xf32> to vector<2x4x128xf32>
    %20 = arith.addf %18, %19 : vector<2x4x128xf32>
    %21 = vector.extract_strided_slice %3 {offsets = [0, 2, 1152], sizes = [2, 4, 128], strides = [1, 1, 1]} : vector<2x8x1536xf32> to vector<2x4x128xf32>
    %22 = arith.addf %20, %21 : vector<2x4x128xf32>
    %23 = vector.extract_strided_slice %3 {offsets = [0, 3, 1280], sizes = [2, 4, 128], strides = [1, 1, 1]} : vector<2x8x1536xf32> to vector<2x4x128xf32>
    %24 = arith.addf %22, %23 : vector<2x4x128xf32>
    %25 = vector.extract_strided_slice %3 {offsets = [0, 4, 1408], sizes = [2, 4, 128], strides = [1, 1, 1]} : vector<2x8x1536xf32> to vector<2x4x128xf32>
    %26 = arith.addf %24, %25 : vector<2x4x128xf32>
    %cst_5 = arith.constant dense<0xFF800000> : vector<2x128xf32>
    %27 = vector.multi_reduction <maximumf>, %26, %cst_5 [1] : vector<2x4x128xf32> to vector<2x128xf32>
    %28 = tpu.concatenate %9, %17, %27 in 1 : vector<2x128xf32>, vector<2x128xf32>, vector<2x128xf32> -> vector<2x384xf32>
    %c0_6 = arith.constant 0 : index
    %c0_7 = arith.constant 0 : index
    %29 = vector.load %arg3[%c0_6, %c0_7] : memref<1x384xf32, #tpu.memory_space<vmem>>, vector<1x384xf32>
    %30 = vector.broadcast %29 : vector<1x384xf32> to vector<2x384xf32>
    %31 = arith.addf %28, %30 : vector<2x384xf32>
    %cst_8 = arith.constant 0.000000e+00 : f32
    %32 = vector.broadcast %cst_8 : f32 to vector<2x384xf32>
    %33 = arith.maximumf %31, %32 : vector<2x384xf32>
    %c0_9 = arith.constant 0 : index
    %c0_10 = arith.constant 0 : index
    %34 = vector.load %arg4[%c0_9, %c0_10] : memref<384x128xf32, #tpu.memory_space<vmem>>, vector<384x128xf32>
    %cst_11 = arith.constant dense<0.000000e+00> : vector<2x128xf32>
    %35 = tpu.matmul %33, %34, %cst_11 {dimension_numbers = #tpu.dot_dimension_numbers<[1], [0], [0], [1], [0, 0, 1, 1], [], []>} : vector<2x384xf32>, vector<384x128xf32>, vector<2x128xf32> -> vector<2x128xf32>
    %c0_12 = arith.constant 0 : index
    %c0_13 = arith.constant 0 : index
    %36 = vector.load %arg5[%c0_12, %c0_13] : memref<1x128xf32, #tpu.memory_space<vmem>>, vector<1x128xf32>
    %37 = vector.broadcast %36 : vector<1x128xf32> to vector<2x128xf32>
    %38 = arith.addf %35, %37 : vector<2x128xf32>
    %39 = tpu.iota {dimensions = array<i32: 1>} : vector<2x128xi32>
    %c2_i32 = arith.constant 2 : i32
    %40 = vector.broadcast %c2_i32 : i32 to vector<2x128xi32>
    %41 = arith.cmpi slt, %39, %40 : vector<2x128xi32>
    %cst_14 = arith.constant -1.000000e+30 : f32
    %42 = vector.broadcast %cst_14 : f32 to vector<2x128xf32>
    %43 = arith.select %41, %38, %42 : vector<2x128xi1>, vector<2x128xf32>
    %cst_15 = arith.constant dense<0xFF800000> : vector<2xf32>
    %44 = vector.multi_reduction <maximumf>, %43, %cst_15 [1] : vector<2x128xf32> to vector<2xf32>
    %45 = vector.shape_cast %44 : vector<2xf32> to vector<2x1xf32>
    %46 = vector.broadcast %45 : vector<2x1xf32> to vector<2x128xf32>
    %47 = arith.subf %43, %46 : vector<2x128xf32>
    %48 = math.exp %47 : vector<2x128xf32>
    %cst_16 = arith.constant dense<0.000000e+00> : vector<2xf32>
    %49 = vector.multi_reduction <add>, %48, %cst_16 [1] : vector<2x128xf32> to vector<2xf32>
    %50 = vector.shape_cast %49 : vector<2xf32> to vector<2x1xf32>
    %51 = tpu.reciprocal %50 {approx = true} : vector<2x1xf32> -> vector<2x1xf32>
    %52 = vector.broadcast %51 : vector<2x1xf32> to vector<2x128xf32>
    %53 = arith.mulf %48, %52 : vector<2x128xf32>
    %c0_17 = arith.constant 0 : index
    %c0_18 = arith.constant 0 : index
    %54 = vector.load %arg6[%c0_17, %c0_18] : memref<2x128xf32, #tpu.memory_space<vmem>>, vector<2x128xf32>
    tpu.vector_store %arg6[%c0_17, %c0_18], %53 {strides = array<i32>} : memref<2x128xf32, #tpu.memory_space<vmem>>, vector<2x128xf32>,
    return
  }
  func.func @transform_0(%arg0: i32) -> (i32, i32) {
    %c0_i32 = arith.constant 0 : i32
    %c0_i32_0 = arith.constant 0 : i32
    return %arg0, %c0_i32 : i32, i32
  }
  func.func @transform_1(%arg0: i32) -> (i32, i32) {
    %c0_i32 = arith.constant 0 : i32
    %c0_i32_0 = arith.constant 0 : i32
    %c0_i32_1 = arith.constant 0 : i32
    return %c0_i32, %c0_i32_0 : i32, i32
  }
  func.func @transform_2(%arg0: i32) -> (i32, i32) {
    %c0_i32 = arith.constant 0 : i32
    %c0_i32_0 = arith.constant 0 : i32
    %c0_i32_1 = arith.constant 0 : i32
    return %c0_i32, %c0_i32_0 : i32, i32
  }
  func.func @transform_3(%arg0: i32) -> (i32, i32) {
    %c0_i32 = arith.constant 0 : i32
    %c0_i32_0 = arith.constant 0 : i32
    %c0_i32_1 = arith.constant 0 : i32
    return %c0_i32, %c0_i32_0 : i32, i32
  }
  func.func @transform_4(%arg0: i32) -> (i32, i32) {
    %c0_i32 = arith.constant 0 : i32
    %c0_i32_0 = arith.constant 0 : i32
    %c0_i32_1 = arith.constant 0 : i32
    return %c0_i32, %c0_i32_0 : i32, i32
  }
  func.func @transform_5(%arg0: i32) -> (i32, i32) {
    %c0_i32 = arith.constant 0 : i32
    %c0_i32_0 = arith.constant 0 : i32
    return %arg0, %c0_i32 : i32, i32
  }
}

</mosaic_0001>

<llo_original>
// kernel: tpu_custom_call.1
$region0: #{tpu_custom_call.1}
  #allocation0 [shape = 'u32[]', space=smem, size = 0x4, offset = 0x4, fixed_abs, tag = 'smem constant byte address 0x4 - core index']
  #allocation1 [shape = 'u32[144,128]{1,0:T(1,128)}', space=vmem, size = 0x12000, scoped, tag = 'internal scratch']
  %s0 = inlined_call_operand.hbm [shape: bf16[16,384], index: 0, kind: input, shape index: {}]
  %s1 = inlined_call_operand.hbm [shape: bf16[384,1536], index: 1, kind: input, shape index: {}]
  %s2 = inlined_call_operand.hbm [shape: f32[1,384], index: 2, kind: input, shape index: {}]
  %s3 = inlined_call_operand.hbm [shape: f32[384,128], index: 3, kind: input, shape index: {}]
  %s4 = inlined_call_operand.hbm [shape: f32[1,128], index: 4, kind: input, shape index: {}]
  %s5 = inlined_call_operand.hbm [shape: f32[2,128], index: 5, kind: output, shape index: {}]
  %s6 = sld [smem:[#allocation0]]
  $region50: #{tpu_custom_call.1} parent=0
    _
  %s8 = ssub.s32 1, %s6
  %s9 = scalar_select 0, %s8, %s6
  $region1: #{tpu_custom_call.1} parent=0
    #allocation2 [shape = 'u8[12288]{0}', space=vmem, size = 0x3000, scoped, tag = 'input window, operand 0, single buffered']
    #allocation3 [shape = 's32[1]{0}', space=sflag, size = 0x4, scoped, tag = 'scoped memory for tpu_custom_call.1']
    #allocation4 [shape = 's32[1]{0}', space=sflag, size = 0x4, scoped, tag = 'scoped memory for tpu_custom_call.1']
    #allocation5 [shape = 'u8[1179648]{0}', space=vmem, size = 0x120000, scoped, tag = 'input window, operand 1, single buffered']
    #allocation6 [shape = 's32[1]{0}', space=sflag, size = 0x4, scoped, tag = 'scoped memory for tpu_custom_call.1']
    #allocation7 [shape = 'u8[1536]{0}', space=vmem, size = 0x800, scoped, tag = 'input window, operand 2, single buffered']
    #allocation8 [shape = 'u8[196608]{0}', space=vmem, size = 0x30000, scoped, tag = 'input window, operand 3, single buffered']
    #allocation9 [shape = 's32[1]{0}', space=sflag, size = 0x4, scoped, tag = 'scoped memory for tpu_custom_call.1']
    #allocation10 [shape = 'u8[512]{0}', space=vmem, size = 0x400, scoped, tag = 'input window, operand 4, single buffered']
    #allocation11 [shape = 'u8[1024]{0}', space=vmem, size = 0x400, scoped, tag = 'output window, operand 0, single buffered']
    %10 = vsyncpa [#allocation3], 0
    %11 = vsyncpa [#allocation6], 0
    %12 = vsyncpa [#allocation9], 0
    %13 = vsyncpa [#allocation4], 0
    // Predicated region
    $region2: #{tpu_custom_call.1} parent=1 // pred_check
      _
    $region3: #{tpu_custom_call.1} parent=1 // pred_check_branch
      %15 = sbr.rel (0) target = $region5
    $region4: #{tpu_custom_call.1} parent=1 // pred_region
      %s17 = ssub.s32 384, 384
      %18 = vsyncadd [#allocation3], %s17
      %s19 = sshll.u32 [#allocation2], 4
      %s20 = int_to_ptr.vmem [resolvable:$true] %s19
      %25 = dma.hbm_to_vmem [thread:$0]  %s0, 384, %s20, [#allocation3], 192, 192, 12
    $region5: #{tpu_custom_call.1} parent=1 // pred_fallthru
      _
    // Predicated region
    $region6: #{tpu_custom_call.1} parent=1 // pred_check
      _
    $region7: #{tpu_custom_call.1} parent=1 // pred_check_branch
      %27 = sbr.rel (0) target = $region9
    $region8: #{tpu_custom_call.1} parent=1 // pred_region
      %s29 = ssub.s32 36864, 36864
      %30 = vsyncadd [#allocation6], %s29
      %s31 = sshll.u32 [#allocation5], 4
      %s32 = int_to_ptr.vmem [resolvable:$true] %s31
      %37 = dma.hbm_to_vmem [thread:$0]  %s1, 36864, %s32, [#allocation6], 768, 768, 48
    $region9: #{tpu_custom_call.1} parent=1 // pred_fallthru
      _
    // Predicated region
    $region10: #{tpu_custom_call.1} parent=1 // pred_check
      _
    $region11: #{tpu_custom_call.1} parent=1 // pred_check_branch
      %39 = sbr.rel (0) target = $region13
    $region12: #{tpu_custom_call.1} parent=1 // pred_region
      %s41 = ssub.s32 48, 48
      %42 = vsyncadd [#allocation6], %s41
      %s44 = sshll.u32 [#allocation7], 4
      %s45 = int_to_ptr.vmem [resolvable:$true] %s44
      %47 = dma.hbm_to_vmem [thread:$0]  %s2, 48, %s45, [#allocation6]
    $region13: #{tpu_custom_call.1} parent=1 // pred_fallthru
      _
    // Predicated region
    $region14: #{tpu_custom_call.1} parent=1 // pred_check
      _
    $region15: #{tpu_custom_call.1} parent=1 // pred_check_branch
      %49 = sbr.rel (0) target = $region17
    $region16: #{tpu_custom_call.1} parent=1 // pred_region
      %s51 = ssub.s32 6144, 6144
      %52 = vsyncadd [#allocation9], %s51
      %s53 = sshll.u32 [#allocation8], 4
      %s54 = int_to_ptr.vmem [resolvable:$true] %s53
      %59 = dma.hbm_to_vmem [thread:$0]  %s3, 6144, %s54, [#allocation9], 128, 128, 8
    $region17: #{tpu_custom_call.1} parent=1 // pred_fallthru
      _
    // Predicated region
    $region18: #{tpu_custom_call.1} parent=1 // pred_check
      _
    $region19: #{tpu_custom_call.1} parent=1 // pred_check_branch
      %61 = sbr.rel (0) target = $region21
    $region20: #{tpu_custom_call.1} parent=1 // pred_region
      %s63 = ssub.s32 16, 16
      %64 = vsyncadd [#allocation9], %s63
      %s66 = sshll.u32 [#allocation10], 4
      %s67 = int_to_ptr.vmem [resolvable:$true] %s66
      %69 = dma.hbm_to_vmem [thread:$0]  %s4, 16, %s67, [#allocation9]
    $region21: #{tpu_custom_call.1} parent=1 // pred_fallthru
      _
    // Predicated region
    $region22: #{tpu_custom_call.1} parent=1 // pred_check
      _
    $region23: #{tpu_custom_call.1} parent=1 // pred_check_branch
      %71 = sbr.rel (0) target = $region25
    $region24: #{tpu_custom_call.1} parent=1 // pred_region
      %72 = dma.done [#allocation3], 384
    $region25: #{tpu_custom_call.1} parent=1 // pred_fallthru
      _
    // Predicated region
    $region26: #{tpu_custom_call.1} parent=1 // pred_check
      _
    $region27: #{tpu_custom_call.1} parent=1 // pred_check_branch
      %74 = sbr.rel (0) target = $region29
    $region28: #{tpu_custom_call.1} parent=1 // pred_region
      %75 = dma.done [#allocation6], 36864
    $region29: #{tpu_custom_call.1} parent=1 // pred_fallthru
      _
    // Predicated region
    $region30: #{tpu_custom_call.1} parent=1 // pred_check
      _
    $region31: #{tpu_custom_call.1} parent=1 // pred_check_branch
      %77 = sbr.rel (0) target = $region33
    $region32: #{tpu_custom_call.1} parent=1 // pred_region
      %78 = dma.done [#allocation6], 48
    $region33: #{tpu_custom_call.1} parent=1 // pred_fallthru
      _
    // Predicated region
    $region34: #{tpu_custom_call.1} parent=1 // pred_check
      _
    $region35: #{tpu_custom_call.1} parent=1 // pred_check_branch
      %80 = sbr.rel (0) target = $region37
    $region36: #{tpu_custom_call.1} parent=1 // pred_region
      %81 = dma.done [#allocation9], 6144
    $region37: #{tpu_custom_call.1} parent=1 // pred_fallthru
      _
    // Predicated region
    $region38: #{tpu_custom_call.1} parent=1 // pred_check
      _
    $region39: #{tpu_custom_call.1} parent=1 // pred_check_branch
      %83 = sbr.rel (0) target = $region41
    $region40: #{tpu_custom_call.1} parent=1 // pred_region
      %84 = dma.done [#allocation9], 16
    $region41: #{tpu_custom_call.1} parent=1 // pred_fallthru
      _
    %v86 = vld [vmem:[#allocation2] sm:$0xff]
    %v87 = vld [vmem:[#allocation2 + $0x8] sm:$0xf]
    %v88 = vld [vmem:[#allocation2 + $0xc] sm:$0xff]
    %v89 = vld [vmem:[#allocation2 + $0x14] sm:$0xf]
    %v90 = vld [vmem:[#allocation5] sm:$0xff]
    %v91 = vld [vmem:[#allocation5 + $0x8] sm:$0xff]
    %v92 = vld [vmem:[#allocation5 + $0x10] sm:$0xff]
    %v93 = vld [vmem:[#allocation5 + $0x18] sm:$0xff]
    %v94 = vld [vmem:[#allocation5 + $0x20] sm:$0xff]
    %v95 = vld [vmem:[#allocation5 + $0x28] sm:$0xff]
    %v96 = vld [vmem:[#allocation5 + $0x30] sm:$0xff]
    %v97 = vld [vmem:[#allocation5 + $0x38] sm:$0xff]
    %v98 = vld [vmem:[#allocation5 + $0x40] sm:$0xff]
    %v99 = vld [vmem:[#allocation5 + $0x48] sm:$0xff]
    %v100 = vld [vmem:[#allocation5 + $0x50] sm:$0xff]
    %v101 = vld [vmem:[#allocation5 + $0x58] sm:$0xff]
    %v102 = vld [vmem:[#allocation5 + $0x60] sm:$0xff]
    %v103 = vld [vmem:[#allocation5 + $0x68] sm:$0xff]
    %v104 = vld [vmem:[#allocation5 + $0x70] sm:$0xff]
    %v105 = vld [vmem:[#allocation5 + $0x78] sm:$0xff]
    %v106 = vld [vmem:[#allocation5 + $0x80] sm:$0xff]
    %v107 = vld [vmem:[#allocation5 + $0x88] sm:$0xff]
    %v108 = vld [vmem:[#allocation5 + $0x90] sm:$0xff]
    %v109 = vld [vmem:[#allocation5 + $0x98] sm:$0xff]
    %v110 = vld [vmem:[#allocation5 + $0xa0] sm:$0xff]
    %v111 = vld [vmem:[#allocation5 + $0xa8] sm:$0xff]
    %v112 = vld [vmem:[#allocation5 + $0xb0] sm:$0xff]
    %v113 = vld [vmem:[#allocation5 + $0xb8] sm:$0xff]
    %v114 = vld [vmem:[#allocation5 + $0xc0] sm:$0xff]
    %v115 = vld [vmem:[#allocation5 + $0xc8] sm:$0xff]
    %v116 = vld [vmem:[#allocation5 + $0xd0] sm:$0xff]
    %v117 = vld [vmem:[#allocation5 + $0xd8] sm:$0xff]
    %v118 = vld [vmem:[#allocation5 + $0xe0] sm:$0xff]
    %v119 = vld [vmem:[#allocation5 + $0xe8] sm:$0xff]
    %v120 = vld [vmem:[#allocation5 + $0xf0] sm:$0xff]
    %v121 = vld [vmem:[#allocation5 + $0xf8] sm:$0xff]
    %v122 = vld [vmem:[#allocation5 + $0x100] sm:$0xff]
    %v123 = vld [vmem:[#allocation5 + $0x108] sm:$0xff]
    %v124 = vld [vmem:[#allocation5 + $0x110] sm:$0xff]
    %v125 = vld [vmem:[#allocation5 + $0x118] sm:$0xff]
    %v126 = vld [vmem:[#allocation5 + $0x120] sm:$0xff]
    %v127 = vld [vmem:[#allocation5 + $0x128] sm:$0xff]
    %v128 = vld [vmem:[#allocation5 + $0x130] sm:$0xff]
    %v129 = vld [vmem:[#allocation5 + $0x138] sm:$0xff]
    %v130 = vld [vmem:[#allocation5 + $0x140] sm:$0xff]
    %v131 = vld [vmem:[#allocation5 + $0x148] sm:$0xff]
    %v132 = vld [vmem:[#allocation5 + $0x150] sm:$0xff]
    %v133 = vld [vmem:[#allocation5 + $0x158] sm:$0xff]
    %v134 = vld [vmem:[#allocation5 + $0x160] sm:$0xff]
    %v135 = vld [vmem:[#allocation5 + $0x168] sm:$0xff]
    %v136 = vld [vmem:[#allocation5 + $0x170] sm:$0xff]
    %v137 = vld [vmem:[#allocation5 + $0x178] sm:$0xff]
    %v138 = vld [vmem:[#allocation5 + $0x180] sm:$0xff]
    %v139 = vld [vmem:[#allocation5 + $0x188] sm:$0xff]
    %v140 = vld [vmem:[#allocation5 + $0x190] sm:$0xff]
    %v141 = vld [vmem:[#allocation5 + $0x198] sm:$0xff]
    %v142 = vld [vmem:[#allocation5 + $0x1a0] sm:$0xff]
    %v143 = vld [vmem:[#allocation5 + $0x1a8] sm:$0xff]
    %v144 = vld [vmem:[#allocation5 + $0x1b0] sm:$0xff]
    %v145 = vld [vmem:[#allocation5 + $0x1b8] sm:$0xff]
    %v146 = vld [vmem:[#allocation5 + $0x1c0] sm:$0xff]
    %v147 = vld [vmem:[#allocation5 + $0x1c8] sm:$0xff]
    %v148 = vld [vmem:[#allocation5 + $0x1d0] sm:$0xff]
    %v149 = vld [vmem:[#allocation5 + $0x1d8] sm:$0xff]
    %v150 = vld [vmem:[#allocation5 + $0x1e0] sm:$0xff]
    %v151 = vld [vmem:[#allocation5 + $0x1e8] sm:$0xff]
    %v152 = vld [vmem:[#allocation5 + $0x1f0] sm:$0xff]
    %v153 = vld [vmem:[#allocation5 + $0x1f8] sm:$0xff]
    %v154 = vld [vmem:[#allocation5 + $0x200] sm:$0xff]
    %v155 = vld [vmem:[#allocation5 + $0x208] sm:$0xff]
    %v156 = vld [vmem:[#allocation5 + $0x210] sm:$0xff]
    %v157 = vld [vmem:[#allocation5 + $0x218] sm:$0xff]
    %v158 = vld [vmem:[#allocation5 + $0x220] sm:$0xff]
    %v159 = vld [vmem:[#allocation5 + $0x228] sm:$0xff]
    %v160 = vld [vmem:[#allocation5 + $0x230] sm:$0xff]
    %v161 = vld [vmem:[#allocation5 + $0x238] sm:$0xff]
    %v162 = vld [vmem:[#allocation5 + $0x240] sm:$0xff]
    %v163 = vld [vmem:[#allocation5 + $0x248] sm:$0xff]
    %v164 = vld [vmem:[#allocation5 + $0x250] sm:$0xff]
    %v165 = vld [vmem:[#allocation5 + $0x258] sm:$0xff]
    %v166 = vld [vmem:[#allocation5 + $0x260] sm:$0xff]
    %v167 = vld [vmem:[#allocation5 + $0x268] sm:$0xff]
    %v168 = vld [vmem:[#allocation5 + $0x270] sm:$0xff]
    %v169 = vld [vmem:[#allocation5 + $0x278] sm:$0xff]
    %v170 = vld [vmem:[#allocation5 + $0x280] sm:$0xff]
    %v171 = vld [vmem:[#allocation5 + $0x288] sm:$0xff]
    %v172 = vld [vmem:[#allocation5 + $0x290] sm:$0xff]
    %v173 = vld [vmem:[#allocation5 + $0x298] sm:$0xff]
    %v174 = vld [vmem:[#allocation5 + $0x2a0] sm:$0xff]
    %v175 = vld [vmem:[#allocation5 + $0x2a8] sm:$0xff]
    %v176 = vld [vmem:[#allocation5 + $0x2b0] sm:$0xff]
    %v177 = vld [vmem:[#allocation5 + $0x2b8] sm:$0xff]
    %v178 = vld [vmem:[#allocation5 + $0x2c0] sm:$0xff]
    %v179 = vld [vmem:[#allocation5 + $0x2c8] sm:$0xff]
    %v180 = vld [vmem:[#allocation5 + $0x2d0] sm:$0xff]
    %v181 = vld [vmem:[#allocation5 + $0x2d8] sm:$0xff]
    %v182 = vld [vmem:[#allocation5 + $0x2e0] sm:$0xff]
    %v183 = vld [vmem:[#allocation5 + $0x2e8] sm:$0xff]
    %v184 = vld [vmem:[#allocation5 + $0x2f0] sm:$0xff]
    %v185 = vld [vmem:[#allocation5 + $0x2f8] sm:$0xff]
    %v186 = vld [vmem:[#allocation5 + $0x300] sm:$0xff]
    %v187 = vld [vmem:[#allocation5 + $0x308] sm:$0xff]
    %v188 = vld [vmem:[#allocation5 + $0x310] sm:$0xff]
    %v189 = vld [vmem:[#allocation5 + $0x318] sm:$0xff]
    %v190 = vld [vmem:[#allocation5 + $0x320] sm:$0xff]
    %v191 = vld [vmem:[#allocation5 + $0x328] sm:$0xff]
    %v192 = vld [vmem:[#allocation5 + $0x330] sm:$0xff]
    %v193 = vld [vmem:[#allocation5 + $0x338] sm:$0xff]
    %v194 = vld [vmem:[#allocation5 + $0x340] sm:$0xff]
    %v195 = vld [vmem:[#allocation5 + $0x348] sm:$0xff]
    %v196 = vld [vmem:[#allocation5 + $0x350] sm:$0xff]
    %v197 = vld [vmem:[#allocation5 + $0x358] sm:$0xff]
    %v198 = vld [vmem:[#allocation5 + $0x360] sm:$0xff]
    %v199 = vld [vmem:[#allocation5 + $0x368] sm:$0xff]
    %v200 = vld [vmem:[#allocation5 + $0x370] sm:$0xff]
    %v201 = vld [vmem:[#allocation5 + $0x378] sm:$0xff]
    %v202 = vld [vmem:[#allocation5 + $0x380] sm:$0xff]
    %v203 = vld [vmem:[#allocation5 + $0x388] sm:$0xff]
    %v204 = vld [vmem:[#allocation5 + $0x390] sm:$0xff]
    %v205 = vld [vmem:[#allocation5 + $0x398] sm:$0xff]
    %v206 = vld [vmem:[#allocation5 + $0x3a0] sm:$0xff]
    %v207 = vld [vmem:[#allocation5 + $0x3a8] sm:$0xff]
    %v208 = vld [vmem:[#allocation5 + $0x3b0] sm:$0xff]
    %v209 = vld [vmem:[#allocation5 + $0x3b8] sm:$0xff]
    %v210 = vld [vmem:[#allocation5 + $0x3c0] sm:$0xff]
    %v211 = vld [vmem:[#allocation5 + $0x3c8] sm:$0xff]
    %v212 = vld [vmem:[#allocation5 + $0x3d0] sm:$0xff]
    %v213 = vld [vmem:[#allocation5 + $0x3d8] sm:$0xff]
    %v214 = vld [vmem:[#allocation5 + $0x3e0] sm:$0xff]
    %v215 = vld [vmem:[#allocation5 + $0x3e8] sm:$0xff]
    %v216 = vld [vmem:[#allocation5 + $0x3f0] sm:$0xff]
    %v217 = vld [vmem:[#allocation5 + $0x3f8] sm:$0xff]
    %v218 = vld [vmem:[#allocation5 + $0x400] sm:$0xff]
    %v219 = vld [vmem:[#allocation5 + $0x408] sm:$0xff]
    %v220 = vld [vmem:[#allocation5 + $0x410] sm:$0xff]
    %v221 = vld [vmem:[#allocation5 + $0x418] sm:$0xff]
    %v222 = vld [vmem:[#allocation5 + $0x420] sm:$0xff]
    %v223 = vld [vmem:[#allocation5 + $0x428] sm:$0xff]
    %v224 = vld [vmem:[#allocation5 + $0x430] sm:$0xff]
    %v225 = vld [vmem:[#allocation5 + $0x438] sm:$0xff]
    %v226 = vld [vmem:[#allocation5 + $0x440] sm:$0xff]
    %v227 = vld [vmem:[#allocation5 + $0x448] sm:$0xff]
    %v228 = vld [vmem:[#allocation5 + $0x450] sm:$0xff]
    %v229 = vld [vmem:[#allocation5 + $0x458] sm:$0xff]
    %v230 = vld [vmem:[#allocation5 + $0x460] sm:$0xff]
    %v231 = vld [vmem:[#allocation5 + $0x468] sm:$0xff]
    %v232 = vld [vmem:[#allocation5 + $0x470] sm:$0xff]
    %v233 = vld [vmem:[#allocation5 + $0x478] sm:$0xff]
    %v234 = vld [vmem:[#allocation5 + $0x480] sm:$0xff]
    %v235 = vld [vmem:[#allocation5 + $0x488] sm:$0xff]
    %v236 = vld [vmem:[#allocation5 + $0x490] sm:$0xff]
    %v237 = vld [vmem:[#allocation5 + $0x498] sm:$0xff]
    %v238 = vld [vmem:[#allocation5 + $0x4a0] sm:$0xff]
    %v239 = vld [vmem:[#allocation5 + $0x4a8] sm:$0xff]
    %v240 = vld [vmem:[#allocation5 + $0x4b0] sm:$0xff]
    %v241 = vld [vmem:[#allocation5 + $0x4b8] sm:$0xff]
    %v242 = vld [vmem:[#allocation5 + $0x4c0] sm:$0xff]
    %v243 = vld [vmem:[#allocation5 + $0x4c8] sm:$0xff]
    %v244 = vld [vmem:[#allocation5 + $0x4d0] sm:$0xff]
    %v245 = vld [vmem:[#allocation5 + $0x4d8] sm:$0xff]
    %v246 = vld [vmem:[#allocation5 + $0x4e0] sm:$0xff]
    %v247 = vld [vmem:[#allocation5 + $0x4e8] sm:$0xff]
    %v248 = vld [vmem:[#allocation5 + $0x4f0] sm:$0xff]
    %v249 = vld [vmem:[#allocation5 + $0x4f8] sm:$0xff]
    %v250 = vld [vmem:[#allocation5 + $0x500] sm:$0xff]
    %v251 = vld [vmem:[#allocation5 + $0x508] sm:$0xff]
    %v252 = vld [vmem:[#allocation5 + $0x510] sm:$0xff]
    %v253 = vld [vmem:[#allocation5 + $0x518] sm:$0xff]
    %v254 = vld [vmem:[#allocation5 + $0x520] sm:$0xff]
    %v255 = vld [vmem:[#allocation5 + $0x528] sm:$0xff]
    %v256 = vld [vmem:[#allocation5 + $0x530] sm:$0xff]
    %v257 = vld [vmem:[#allocation5 + $0x538] sm:$0xff]
    %v258 = vld [vmem:[#allocation5 + $0x540] sm:$0xff]
    %v259 = vld [vmem:[#allocation5 + $0x548] sm:$0xff]
    %v260 = vld [vmem:[#allocation5 + $0x550] sm:$0xff]
    %v261 = vld [vmem:[#allocation5 + $0x558] sm:$0xff]
    %v262 = vld [vmem:[#allocation5 + $0x560] sm:$0xff]
    %v263 = vld [vmem:[#allocation5 + $0x568] sm:$0xff]
    %v264 = vld [vmem:[#allocation5 + $0x570] sm:$0xff]
    %v265 = vld [vmem:[#allocation5 + $0x578] sm:$0xff]
    %v266 = vld [vmem:[#allocation5 + $0x580] sm:$0xff]
    %v267 = vld [vmem:[#allocation5 + $0x588] sm:$0xff]
    %v268 = vld [vmem:[#allocation5 + $0x590] sm:$0xff]
    %v269 = vld [vmem:[#allocation5 + $0x598] sm:$0xff]
    %v270 = vld [vmem:[#allocation5 + $0x5a0] sm:$0xff]
    %v271 = vld [vmem:[#allocation5 + $0x5a8] sm:$0xff]
    %v272 = vld [vmem:[#allocation5 + $0x5b0] sm:$0xff]
    %v273 = vld [vmem:[#allocation5 + $0x5b8] sm:$0xff]
    %v274 = vld [vmem:[#allocation5 + $0x5c0] sm:$0xff]
    %v275 = vld [vmem:[#allocation5 + $0x5c8] sm:$0xff]
    %v276 = vld [vmem:[#allocation5 + $0x5d0] sm:$0xff]
    %v277 = vld [vmem:[#allocation5 + $0x5d8] sm:$0xff]
    %v278 = vld [vmem:[#allocation5 + $0x5e0] sm:$0xff]
    %v279 = vld [vmem:[#allocation5 + $0x5e8] sm:$0xff]
    %v280 = vld [vmem:[#allocation5 + $0x5f0] sm:$0xff]
    %v281 = vld [vmem:[#allocation5 + $0x5f8] sm:$0xff]
    %v282 = vld [vmem:[#allocation5 + $0x600] sm:$0xff]
    %v283 = vld [vmem:[#allocation5 + $0x608] sm:$0xff]
    %v284 = vld [vmem:[#allocation5 + $0x610] sm:$0xff]
    %v285 = vld [vmem:[#allocation5 + $0x618] sm:$0xff]
    %v286 = vld [vmem:[#allocation5 + $0x620] sm:$0xff]
    %v287 = vld [vmem:[#allocation5 + $0x628] sm:$0xff]
    %v288 = vld [vmem:[#allocation5 + $0x630] sm:$0xff]
    %v289 = vld [vmem:[#allocation5 + $0x638] sm:$0xff]
    %v290 = vld [vmem:[#allocation5 + $0x640] sm:$0xff]
    %v291 = vld [vmem:[#allocation5 + $0x648] sm:$0xff]
    %v292 = vld [vmem:[#allocation5 + $0x650] sm:$0xff]
    %v293 = vld [vmem:[#allocation5 + $0x658] sm:$0xff]
    %v294 = vld [vmem:[#allocation5 + $0x660] sm:$0xff]
    %v295 = vld [vmem:[#allocation5 + $0x668] sm:$0xff]
    %v296 = vld [vmem:[#allocation5 + $0x670] sm:$0xff]
    %v297 = vld [vmem:[#allocation5 + $0x678] sm:$0xff]
    %v298 = vld [vmem:[#allocation5 + $0x680] sm:$0xff]
    %v299 = vld [vmem:[#allocation5 + $0x688] sm:$0xff]
    %v300 = vld [vmem:[#allocation5 + $0x690] sm:$0xff]
    %v301 = vld [vmem:[#allocation5 + $0x698] sm:$0xff]
    %v302 = vld [vmem:[#allocation5 + $0x6a0] sm:$0xff]
    %v303 = vld [vmem:[#allocation5 + $0x6a8] sm:$0xff]
    %v304 = vld [vmem:[#allocation5 + $0x6b0] sm:$0xff]
    %v305 = vld [vmem:[#allocation5 + $0x6b8] sm:$0xff]
    %v306 = vld [vmem:[#allocation5 + $0x6c0] sm:$0xff]
    %v307 = vld [vmem:[#allocation5 + $0x6c8] sm:$0xff]
    %v308 = vld [vmem:[#allocation5 + $0x6d0] sm:$0xff]
    %v309 = vld [vmem:[#allocation5 + $0x6d8] sm:$0xff]
    %v310 = vld [vmem:[#allocation5 + $0x6e0] sm:$0xff]
    %v311 = vld [vmem:[#allocation5 + $0x6e8] sm:$0xff]
    %v312 = vld [vmem:[#allocation5 + $0x6f0] sm:$0xff]
    %v313 = vld [vmem:[#allocation5 + $0x6f8] sm:$0xff]
    %v314 = vld [vmem:[#allocation5 + $0x700] sm:$0xff]
    %v315 = vld [vmem:[#allocation5 + $0x708] sm:$0xff]
    %v316 = vld [vmem:[#allocation5 + $0x710] sm:$0xff]
    %v317 = vld [vmem:[#allocation5 + $0x718] sm:$0xff]
    %v318 = vld [vmem:[#allocation5 + $0x720] sm:$0xff]
    %v319 = vld [vmem:[#allocation5 + $0x728] sm:$0xff]
    %v320 = vld [vmem:[#allocation5 + $0x730] sm:$0xff]
    %v321 = vld [vmem:[#allocation5 + $0x738] sm:$0xff]
    %v322 = vld [vmem:[#allocation5 + $0x740] sm:$0xff]
    %v323 = vld [vmem:[#allocation5 + $0x748] sm:$0xff]
    %v324 = vld [vmem:[#allocation5 + $0x750] sm:$0xff]
    %v325 = vld [vmem:[#allocation5 + $0x758] sm:$0xff]
    %v326 = vld [vmem:[#allocation5 + $0x760] sm:$0xff]
    %v327 = vld [vmem:[#allocation5 + $0x768] sm:$0xff]
    %v328 = vld [vmem:[#allocation5 + $0x770] sm:$0xff]
    %v329 = vld [vmem:[#allocation5 + $0x778] sm:$0xff]
    %v330 = vld [vmem:[#allocation5 + $0x780] sm:$0xff]
    %v331 = vld [vmem:[#allocation5 + $0x788] sm:$0xff]
    %v332 = vld [vmem:[#allocation5 + $0x790] sm:$0xff]
    %v333 = vld [vmem:[#allocation5 + $0x798] sm:$0xff]
    %v334 = vld [vmem:[#allocation5 + $0x7a0] sm:$0xff]
    %v335 = vld [vmem:[#allocation5 + $0x7a8] sm:$0xff]
    %v336 = vld [vmem:[#allocation5 + $0x7b0] sm:$0xff]
    %v337 = vld [vmem:[#allocation5 + $0x7b8] sm:$0xff]
    %v338 = vld [vmem:[#allocation5 + $0x7c0] sm:$0xff]
    %v339 = vld [vmem:[#allocation5 + $0x7c8] sm:$0xff]
    %v340 = vld [vmem:[#allocation5 + $0x7d0] sm:$0xff]
    %v341 = vld [vmem:[#allocation5 + $0x7d8] sm:$0xff]
    %v342 = vld [vmem:[#allocation5 + $0x7e0] sm:$0xff]
    %v343 = vld [vmem:[#allocation5 + $0x7e8] sm:$0xff]
    %v344 = vld [vmem:[#allocation5 + $0x7f0] sm:$0xff]
    %v345 = vld [vmem:[#allocation5 + $0x7f8] sm:$0xff]
    %v346 = vld [vmem:[#allocation5 + $0x800] sm:$0xff]
    %v347 = vld [vmem:[#allocation5 + $0x808] sm:$0xff]
    %v348 = vld [vmem:[#allocation5 + $0x810] sm:$0xff]
    %v349 = vld [vmem:[#allocation5 + $0x818] sm:$0xff]
    %v350 = vld [vmem:[#allocation5 + $0x820] sm:$0xff]
    %v351 = vld [vmem:[#allocation5 + $0x828] sm:$0xff]
    %v352 = vld [vmem:[#allocation5 + $0x830] sm:$0xff]
    %v353 = vld [vmem:[#allocation5 + $0x838] sm:$0xff]
    %v354 = vld [vmem:[#allocation5 + $0x840] sm:$0xff]
    %v355 = vld [vmem:[#allocation5 + $0x848] sm:$0xff]
    %v356 = vld [vmem:[#allocation5 + $0x850] sm:$0xff]
    %v357 = vld [vmem:[#allocation5 + $0x858] sm:$0xff]
    %v358 = vld [vmem:[#allocation5 + $0x860] sm:$0xff]
    %v359 = vld [vmem:[#allocation5 + $0x868] sm:$0xff]
    %v360 = vld [vmem:[#allocation5 + $0x870] sm:$0xff]
    %v361 = vld [vmem:[#allocation5 + $0x878] sm:$0xff]
    %v362 = vld [vmem:[#allocation5 + $0x880] sm:$0xff]
    %v363 = vld [vmem:[#allocation5 + $0x888] sm:$0xff]
    %v364 = vld [vmem:[#allocation5 + $0x890] sm:$0xff]
    %v365 = vld [vmem:[#allocation5 + $0x898] sm:$0xff]
    %v366 = vld [vmem:[#allocation5 + $0x8a0] sm:$0xff]
    %v367 = vld [vmem:[#allocation5 + $0x8a8] sm:$0xff]
    %v368 = vld [vmem:[#allocation5 + $0x8b0] sm:$0xff]
    %v369 = vld [vmem:[#allocation5 + $0x8b8] sm:$0xff]
    %v370 = vld [vmem:[#allocation5 + $0x8c0] sm:$0xff]
    %v371 = vld [vmem:[#allocation5 + $0x8c8] sm:$0xff]
    %v372 = vld [vmem:[#allocation5 + $0x8d0] sm:$0xff]
    %v373 = vld [vmem:[#allocation5 + $0x8d8] sm:$0xff]
    %v374 = vld [vmem:[#allocation5 + $0x8e0] sm:$0xff]
    %v375 = vld [vmem:[#allocation5 + $0x8e8] sm:$0xff]
    %v376 = vld [vmem:[#allocation5 + $0x8f0] sm:$0xff]
    %v377 = vld [vmem:[#allocation5 + $0x8f8] sm:$0xff]
    %v382 = vunpack.c.l.b16 %v86
    %v383 = vunpack.c.h.b16 %v86
    %v384 = vunpack.c.l.b16 %v87
    %v385 = vunpack.c.l.b16 %v88
    %v386 = vunpack.c.h.b16 %v88
    %v387 = vunpack.c.l.b16 %v89
    %v388 = vpack.c.b16 %v385, %v382
    %v389 = vpack.c.b16 %v386, %v383
    %v390 = vpack.c.b16 %v387, %v384
    %v682 = vunpack.c.l.b16 %v90
    %v683 = vunpack.c.h.b16 %v90
    %v684 = vunpack.c.l.b16 %v91
    %v685 = vunpack.c.h.b16 %v91
    %v686 = vunpack.c.l.b16 %v92
    %v687 = vunpack.c.h.b16 %v92
    %v688 = vunpack.c.l.b16 %v93
    %v689 = vunpack.c.h.b16 %v93
    %v690 = vunpack.c.l.b16 %v94
    %v691 = vunpack.c.h.b16 %v94
    %v692 = vunpack.c.l.b16 %v95
    %v693 = vunpack.c.h.b16 %v95
    %v694 = vunpack.c.l.b16 %v96
    %v695 = vunpack.c.h.b16 %v96
    %v696 = vunpack.c.l.b16 %v97
    %v697 = vunpack.c.h.b16 %v97
    %v698 = vunpack.c.l.b16 %v98
    %v699 = vunpack.c.h.b16 %v98
    %v700 = vunpack.c.l.b16 %v99
    %v701 = vunpack.c.h.b16 %v99
    %v702 = vunpack.c.l.b16 %v100
    %v703 = vunpack.c.h.b16 %v100
    %v704 = vunpack.c.l.b16 %v101
    %v705 = vunpack.c.h.b16 %v101
    %v706 = vunpack.c.l.b16 %v102
    %v707 = vunpack.c.h.b16 %v102
    %v708 = vunpack.c.l.b16 %v103
    %v709 = vunpack.c.h.b16 %v103
    %v710 = vunpack.c.l.b16 %v104
    %v711 = vunpack.c.h.b16 %v104
    %v712 = vunpack.c.l.b16 %v105
    %v713 = vunpack.c.h.b16 %v105
    %v714 = vunpack.c.l.b16 %v106
    %v715 = vunpack.c.h.b16 %v106
    %v716 = vunpack.c.l.b16 %v107
    %v717 = vunpack.c.h.b16 %v107
    %v718 = vunpack.c.l.b16 %v108
    %v719 = vunpack.c.h.b16 %v108
    %v720 = vunpack.c.l.b16 %v109
    %v721 = vunpack.c.h.b16 %v109
    %v722 = vunpack.c.l.b16 %v110
    %v723 = vunpack.c.h.b16 %v110
    %v724 = vunpack.c.l.b16 %v111
    %v725 = vunpack.c.h.b16 %v111
    %v726 = vunpack.c.l.b16 %v112
    %v727 = vunpack.c.h.b16 %v112
    %v728 = vunpack.c.l.b16 %v113
    %v729 = vunpack.c.h.b16 %v113
    %v730 = vunpack.c.l.b16 %v114
    %v731 = vunpack.c.h.b16 %v114
    %v732 = vunpack.c.l.b16 %v115
    %v733 = vunpack.c.h.b16 %v115
    %v734 = vunpack.c.l.b16 %v116
    %v735 = vunpack.c.h.b16 %v116
    %v736 = vunpack.c.l.b16 %v117
    %v737 = vunpack.c.h.b16 %v117
    %v738 = vunpack.c.l.b16 %v118
    %v739 = vunpack.c.h.b16 %v118
    %v740 = vunpack.c.l.b16 %v119
    %v741 = vunpack.c.h.b16 %v119
    %v742 = vunpack.c.l.b16 %v120
    %v743 = vunpack.c.h.b16 %v120
    %v744 = vunpack.c.l.b16 %v121
    %v745 = vunpack.c.h.b16 %v121
    %v746 = vunpack.c.l.b16 %v122
    %v747 = vunpack.c.h.b16 %v122
    %v748 = vunpack.c.l.b16 %v123
    %v749 = vunpack.c.h.b16 %v123
    %v750 = vunpack.c.l.b16 %v124
    %v751 = vunpack.c.h.b16 %v124
    %v752 = vunpack.c.l.b16 %v125
    %v753 = vunpack.c.h.b16 %v125
    %v754 = vunpack.c.l.b16 %v126
    %v755 = vunpack.c.h.b16 %v126
    %v756 = vunpack.c.l.b16 %v127
    %v757 = vunpack.c.h.b16 %v127
    %v758 = vunpack.c.l.b16 %v128
    %v759 = vunpack.c.h.b16 %v128
    %v760 = vunpack.c.l.b16 %v129
    %v761 = vunpack.c.h.b16 %v129
    %v762 = vunpack.c.l.b16 %v130
    %v763 = vunpack.c.h.b16 %v130
    %v764 = vunpack.c.l.b16 %v131
    %v765 = vunpack.c.h.b16 %v131
    %v766 = vunpack.c.l.b16 %v132
    %v767 = vunpack.c.h.b16 %v132
    %v768 = vunpack.c.l.b16 %v133
    %v769 = vunpack.c.h.b16 %v133
    %v770 = vunpack.c.l.b16 %v134
    %v771 = vunpack.c.h.b16 %v134
    %v772 = vunpack.c.l.b16 %v135
    %v773 = vunpack.c.h.b16 %v135
    %v774 = vunpack.c.l.b16 %v136
    %v775 = vunpack.c.h.b16 %v136
    %v776 = vunpack.c.l.b16 %v137
    %v777 = vunpack.c.h.b16 %v137
    %v778 = vunpack.c.l.b16 %v138
    %v779 = vunpack.c.h.b16 %v138
    %v780 = vunpack.c.l.b16 %v139
    %v781 = vunpack.c.h.b16 %v139
    %v782 = vunpack.c.l.b16 %v140
    %v783 = vunpack.c.h.b16 %v140
    %v784 = vunpack.c.l.b16 %v141
    %v785 = vunpack.c.h.b16 %v141
    %v786 = vunpack.c.l.b16 %v142
    %v787 = vunpack.c.h.b16 %v142
    %v788 = vunpack.c.l.b16 %v143
    %v789 = vunpack.c.h.b16 %v143
    %v790 = vunpack.c.l.b16 %v144
    %v791 = vunpack.c.h.b16 %v144
    %v792 = vunpack.c.l.b16 %v145
    %v793 = vunpack.c.h.b16 %v145
    %v794 = vunpack.c.l.b16 %v146
    %v795 = vunpack.c.h.b16 %v146
    %v796 = vunpack.c.l.b16 %v147
    %v797 = vunpack.c.h.b16 %v147
    %v798 = vunpack.c.l.b16 %v148
    %v799 = vunpack.c.h.b16 %v148
    %v800 = vunpack.c.l.b16 %v149
    %v801 = vunpack.c.h.b16 %v149
    %v802 = vunpack.c.l.b16 %v150
    %v803 = vunpack.c.h.b16 %v150
    %v804 = vunpack.c.l.b16 %v151
    %v805 = vunpack.c.h.b16 %v151
    %v806 = vunpack.c.l.b16 %v152
    %v807 = vunpack.c.h.b16 %v152
    %v808 = vunpack.c.l.b16 %v153
    %v809 = vunpack.c.h.b16 %v153
    %v810 = vunpack.c.l.b16 %v154
    %v811 = vunpack.c.h.b16 %v154
    %v812 = vunpack.c.l.b16 %v155
    %v813 = vunpack.c.h.b16 %v155
    %v814 = vunpack.c.l.b16 %v156
    %v815 = vunpack.c.h.b16 %v156
    %v816 = vunpack.c.l.b16 %v157
    %v817 = vunpack.c.h.b16 %v157
    %v818 = vunpack.c.l.b16 %v158
    %v819 = vunpack.c.h.b16 %v158
    %v820 = vunpack.c.l.b16 %v159
    %v821 = vunpack.c.h.b16 %v159
    %v822 = vunpack.c.l.b16 %v160
    %v823 = vunpack.c.h.b16 %v160
    %v824 = vunpack.c.l.b16 %v161
    %v825 = vunpack.c.h.b16 %v161
    %v826 = vunpack.c.l.b16 %v162
    %v827 = vunpack.c.h.b16 %v162
    %v828 = vunpack.c.l.b16 %v163
    %v829 = vunpack.c.h.b16 %v163
    %v830 = vunpack.c.l.b16 %v164
    %v831 = vunpack.c.h.b16 %v164
    %v832 = vunpack.c.l.b16 %v165
    %v833 = vunpack.c.h.b16 %v165
    %v834 = vunpack.c.l.b16 %v166
    %v835 = vunpack.c.h.b16 %v166
    %v836 = vunpack.c.l.b16 %v167
    %v837 = vunpack.c.h.b16 %v167
    %v838 = vunpack.c.l.b16 %v168
    %v839 = vunpack.c.h.b16 %v168
    %v840 = vunpack.c.l.b16 %v169
    %v841 = vunpack.c.h.b16 %v169
    %v842 = vunpack.c.l.b16 %v170
    %v843 = vunpack.c.h.b16 %v170
    %v844 = vunpack.c.l.b16 %v171
    %v845 = vunpack.c.h.b16 %v171
    %v846 = vunpack.c.l.b16 %v172
    %v847 = vunpack.c.h.b16 %v172
    %v848 = vunpack.c.l.b16 %v173
    %v849 = vunpack.c.h.b16 %v173
    %v850 = vunpack.c.l.b16 %v174
    %v851 = vunpack.c.h.b16 %v174
    %v852 = vunpack.c.l.b16 %v175
    %v853 = vunpack.c.h.b16 %v175
    %v854 = vunpack.c.l.b16 %v176
    %v855 = vunpack.c.h.b16 %v176
    %v856 = vunpack.c.l.b16 %v177
    %v857 = vunpack.c.h.b16 %v177
    %v858 = vunpack.c.l.b16 %v178
    %v859 = vunpack.c.h.b16 %v178
    %v860 = vunpack.c.l.b16 %v179
    %v861 = vunpack.c.h.b16 %v179
    %v862 = vunpack.c.l.b16 %v180
    %v863 = vunpack.c.h.b16 %v180
    %v864 = vunpack.c.l.b16 %v181
    %v865 = vunpack.c.h.b16 %v181
    %v866 = vunpack.c.l.b16 %v182
    %v867 = vunpack.c.h.b16 %v182
    %v868 = vunpack.c.l.b16 %v183
    %v869 = vunpack.c.h.b16 %v183
    %v870 = vunpack.c.l.b16 %v184
    %v871 = vunpack.c.h.b16 %v184
    %v872 = vunpack.c.l.b16 %v185
    %v873 = vunpack.c.h.b16 %v185
    %v874 = vunpack.c.l.b16 %v186
    %v875 = vunpack.c.h.b16 %v186
    %v876 = vunpack.c.l.b16 %v187
    %v877 = vunpack.c.h.b16 %v187
    %v878 = vunpack.c.l.b16 %v188
    %v879 = vunpack.c.h.b16 %v188
    %v880 = vunpack.c.l.b16 %v189
    %v881 = vunpack.c.h.b16 %v189
    %v882 = vunpack.c.l.b16 %v190
    %v883 = vunpack.c.h.b16 %v190
    %v884 = vunpack.c.l.b16 %v191
    %v885 = vunpack.c.h.b16 %v191
    %v886 = vunpack.c.l.b16 %v192
    %v887 = vunpack.c.h.b16 %v192
    %v888 = vunpack.c.l.b16 %v193
    %v889 = vunpack.c.h.b16 %v193
    %v890 = vunpack.c.l.b16 %v194
    %v891 = vunpack.c.h.b16 %v194
    %v892 = vunpack.c.l.b16 %v195
    %v893 = vunpack.c.h.b16 %v195
    %v894 = vunpack.c.l.b16 %v196
    %v895 = vunpack.c.h.b16 %v196
    %v896 = vunpack.c.l.b16 %v197
    %v897 = vunpack.c.h.b16 %v197
    %v898 = vunpack.c.l.b16 %v198
    %v899 = vunpack.c.h.b16 %v198
    %v900 = vunpack.c.l.b16 %v199
    %v901 = vunpack.c.h.b16 %v199
    %v902 = vunpack.c.l.b16 %v200
    %v903 = vunpack.c.h.b16 %v200
    %v904 = vunpack.c.l.b16 %v201
    %v905 = vunpack.c.h.b16 %v201
    %v906 = vunpack.c.l.b16 %v202
    %v907 = vunpack.c.h.b16 %v202
    %v908 = vunpack.c.l.b16 %v203
    %v909 = vunpack.c.h.b16 %v203
    %v910 = vunpack.c.l.b16 %v204
    %v911 = vunpack.c.h.b16 %v204
    %v912 = vunpack.c.l.b16 %v205
    %v913 = vunpack.c.h.b16 %v205
    %v914 = vunpack.c.l.b16 %v206
    %v915 = vunpack.c.h.b16 %v206
    %v916 = vunpack.c.l.b16 %v207
    %v917 = vunpack.c.h.b16 %v207
    %v918 = vunpack.c.l.b16 %v208
    %v919 = vunpack.c.h.b16 %v208
    %v920 = vunpack.c.l.b16 %v209
    %v921 = vunpack.c.h.b16 %v209
    %v922 = vunpack.c.l.b16 %v210
    %v923 = vunpack.c.h.b16 %v210
    %v924 = vunpack.c.l.b16 %v211
    %v925 = vunpack.c.h.b16 %v211
    %v926 = vunpack.c.l.b16 %v212
    %v927 = vunpack.c.h.b16 %v212
    %v928 = vunpack.c.l.b16 %v213
    %v929 = vunpack.c.h.b16 %v213
    %v930 = vunpack.c.l.b16 %v214
    %v931 = vunpack.c.h.b16 %v214
    %v932 = vunpack.c.l.b16 %v215
    %v933 = vunpack.c.h.b16 %v215
    %v934 = vunpack.c.l.b16 %v216
    %v935 = vunpack.c.h.b16 %v216
    %v936 = vunpack.c.l.b16 %v217
    %v937 = vunpack.c.h.b16 %v217
    %v938 = vunpack.c.l.b16 %v218
    %v939 = vunpack.c.h.b16 %v218
    %v940 = vunpack.c.l.b16 %v219
    %v941 = vunpack.c.h.b16 %v219
    %v942 = vunpack.c.l.b16 %v220
    %v943 = vunpack.c.h.b16 %v220
    %v944 = vunpack.c.l.b16 %v221
    %v945 = vunpack.c.h.b16 %v221
    %v946 = vunpack.c.l.b16 %v222
    %v947 = vunpack.c.h.b16 %v222
    %v948 = vunpack.c.l.b16 %v223
    %v949 = vunpack.c.h.b16 %v223
    %v950 = vunpack.c.l.b16 %v224
    %v951 = vunpack.c.h.b16 %v224
    %v952 = vunpack.c.l.b16 %v225
    %v953 = vunpack.c.h.b16 %v225
    %v954 = vunpack.c.l.b16 %v226
    %v955 = vunpack.c.h.b16 %v226
    %v956 = vunpack.c.l.b16 %v227
    %v957 = vunpack.c.h.b16 %v227
    %v958 = vunpack.c.l.b16 %v228
    %v959 = vunpack.c.h.b16 %v228
    %v960 = vunpack.c.l.b16 %v229
    %v961 = vunpack.c.h.b16 %v229
    %v962 = vunpack.c.l.b16 %v230
    %v963 = vunpack.c.h.b16 %v230
    %v964 = vunpack.c.l.b16 %v231
    %v965 = vunpack.c.h.b16 %v231
    %v966 = vunpack.c.l.b16 %v232
    %v967 = vunpack.c.h.b16 %v232
    %v968 = vunpack.c.l.b16 %v233
    %v969 = vunpack.c.h.b16 %v233
    %v970 = vunpack.c.l.b16 %v234
    %v971 = vunpack.c.h.b16 %v234
    %v972 = vunpack.c.l.b16 %v235
    %v973 = vunpack.c.h.b16 %v235
    %v974 = vunpack.c.l.b16 %v236
    %v975 = vunpack.c.h.b16 %v236
    %v976 = vunpack.c.l.b16 %v237
    %v977 = vunpack.c.h.b16 %v237
    %v978 = vunpack.c.l.b16 %v238
    %v979 = vunpack.c.h.b16 %v238
    %v980 = vunpack.c.l.b16 %v239
    %v981 = vunpack.c.h.b16 %v239
    %v982 = vunpack.c.l.b16 %v240
    %v983 = vunpack.c.h.b16 %v240
    %v984 = vunpack.c.l.b16 %v241
    %v985 = vunpack.c.h.b16 %v241
    %v986 = vunpack.c.l.b16 %v242
    %v987 = vunpack.c.h.b16 %v242
    %v988 = vunpack.c.l.b16 %v243
    %v989 = vunpack.c.h.b16 %v243
    %v990 = vunpack.c.l.b16 %v244
    %v991 = vunpack.c.h.b16 %v244
    %v992 = vunpack.c.l.b16 %v245
    %v993 = vunpack.c.h.b16 %v245
    %v994 = vunpack.c.l.b16 %v246
    %v995 = vunpack.c.h.b16 %v246
    %v996 = vunpack.c.l.b16 %v247
    %v997 = vunpack.c.h.b16 %v247
    %v998 = vunpack.c.l.b16 %v248
    %v999 = vunpack.c.h.b16 %v248
    %v1000 = vunpack.c.l.b16 %v249
    %v1001 = vunpack.c.h.b16 %v249
    %v1002 = vunpack.c.l.b16 %v250
    %v1003 = vunpack.c.h.b16 %v250
    %v1004 = vunpack.c.l.b16 %v251
    %v1005 = vunpack.c.h.b16 %v251
    %v1006 = vunpack.c.l.b16 %v252
    %v1007 = vunpack.c.h.b16 %v252
    %v1008 = vunpack.c.l.b16 %v253
    %v1009 = vunpack.c.h.b16 %v253
    %v1010 = vunpack.c.l.b16 %v254
    %v1011 = vunpack.c.h.b16 %v254
    %v1012 = vunpack.c.l.b16 %v255
    %v1013 = vunpack.c.h.b16 %v255
    %v1014 = vunpack.c.l.b16 %v256
    %v1015 = vunpack.c.h.b16 %v256
    %v1016 = vunpack.c.l.b16 %v257
    %v1017 = vunpack.c.h.b16 %v257
    %v1018 = vunpack.c.l.b16 %v258
    %v1019 = vunpack.c.h.b16 %v258
    %v1020 = vunpack.c.l.b16 %v259
    %v1021 = vunpack.c.h.b16 %v259
    %v1022 = vunpack.c.l.b16 %v260
    %v1023 = vunpack.c.h.b16 %v260
    %v1024 = vunpack.c.l.b16 %v261
    %v1025 = vunpack.c.h.b16 %v261
    %v1026 = vunpack.c.l.b16 %v262
    %v1027 = vunpack.c.h.b16 %v262
    %v1028 = vunpack.c.l.b16 %v263
    %v1029 = vunpack.c.h.b16 %v263
    %v1030 = vunpack.c.l.b16 %v264
    %v1031 = vunpack.c.h.b16 %v264
    %v1032 = vunpack.c.l.b16 %v265
    %v1033 = vunpack.c.h.b16 %v265
    %v1034 = vunpack.c.l.b16 %v266
    %v1035 = vunpack.c.h.b16 %v266
    %v1036 = vunpack.c.l.b16 %v267
    %v1037 = vunpack.c.h.b16 %v267
    %v1038 = vunpack.c.l.b16 %v268
    %v1039 = vunpack.c.h.b16 %v268
    %v1040 = vunpack.c.l.b16 %v269
    %v1041 = vunpack.c.h.b16 %v269
    %v1042 = vunpack.c.l.b16 %v270
    %v1043 = vunpack.c.h.b16 %v270
    %v1044 = vunpack.c.l.b16 %v271
    %v1045 = vunpack.c.h.b16 %v271
    %v1046 = vunpack.c.l.b16 %v272
    %v1047 = vunpack.c.h.b16 %v272
    %v1048 = vunpack.c.l.b16 %v273
    %v1049 = vunpack.c.h.b16 %v273
    %v1050 = vunpack.c.l.b16 %v274
    %v1051 = vunpack.c.h.b16 %v274
    %v1052 = vunpack.c.l.b16 %v275
    %v1053 = vunpack.c.h.b16 %v275
    %v1054 = vunpack.c.l.b16 %v276
    %v1055 = vunpack.c.h.b16 %v276
    %v1056 = vunpack.c.l.b16 %v277
    %v1057 = vunpack.c.h.b16 %v277
    %v1058 = vunpack.c.l.b16 %v278
    %v1059 = vunpack.c.h.b16 %v278
    %v1060 = vunpack.c.l.b16 %v279
    %v1061 = vunpack.c.h.b16 %v279
    %v1062 = vunpack.c.l.b16 %v280
    %v1063 = vunpack.c.h.b16 %v280
    %v1064 = vunpack.c.l.b16 %v281
    %v1065 = vunpack.c.h.b16 %v281
    %v1066 = vunpack.c.l.b16 %v282
    %v1067 = vunpack.c.h.b16 %v282
    %v1068 = vunpack.c.l.b16 %v283
    %v1069 = vunpack.c.h.b16 %v283
    %v1070 = vunpack.c.l.b16 %v284
    %v1071 = vunpack.c.h.b16 %v284
    %v1072 = vunpack.c.l.b16 %v285
    %v1073 = vunpack.c.h.b16 %v285
    %v1074 = vunpack.c.l.b16 %v286
    %v1075 = vunpack.c.h.b16 %v286
    %v1076 = vunpack.c.l.b16 %v287
    %v1077 = vunpack.c.h.b16 %v287
    %v1078 = vunpack.c.l.b16 %v288
    %v1079 = vunpack.c.h.b16 %v288
    %v1080 = vunpack.c.l.b16 %v289
    %v1081 = vunpack.c.h.b16 %v289
    %v1082 = vunpack.c.l.b16 %v290
    %v1083 = vunpack.c.h.b16 %v290
    %v1084 = vunpack.c.l.b16 %v291
    %v1085 = vunpack.c.h.b16 %v291
    %v1086 = vunpack.c.l.b16 %v292
    %v1087 = vunpack.c.h.b16 %v292
    %v1088 = vunpack.c.l.b16 %v293
    %v1089 = vunpack.c.h.b16 %v293
    %v1090 = vunpack.c.l.b16 %v294
    %v1091 = vunpack.c.h.b16 %v294
    %v1092 = vunpack.c.l.b16 %v295
    %v1093 = vunpack.c.h.b16 %v295
    %v1094 = vunpack.c.l.b16 %v296
    %v1095 = vunpack.c.h.b16 %v296
    %v1096 = vunpack.c.l.b16 %v297
    %v1097 = vunpack.c.h.b16 %v297
    %v1098 = vunpack.c.l.b16 %v298
    %v1099 = vunpack.c.h.b16 %v298
    %v1100 = vunpack.c.l.b16 %v299
    %v1101 = vunpack.c.h.b16 %v299
    %v1102 = vunpack.c.l.b16 %v300
    %v1103 = vunpack.c.h.b16 %v300
    %v1104 = vunpack.c.l.b16 %v301
    %v1105 = vunpack.c.h.b16 %v301
    %v1106 = vunpack.c.l.b16 %v302
    %v1107 = vunpack.c.h.b16 %v302
    %v1108 = vunpack.c.l.b16 %v303
    %v1109 = vunpack.c.h.b16 %v303
    %v1110 = vunpack.c.l.b16 %v304
    %v1111 = vunpack.c.h.b16 %v304
    %v1112 = vunpack.c.l.b16 %v305
    %v1113 = vunpack.c.h.b16 %v305
    %v1114 = vunpack.c.l.b16 %v306
    %v1115 = vunpack.c.h.b16 %v306
    %v1116 = vunpack.c.l.b16 %v307
    %v1117 = vunpack.c.h.b16 %v307
    %v1118 = vunpack.c.l.b16 %v308
    %v1119 = vunpack.c.h.b16 %v308
    %v1120 = vunpack.c.l.b16 %v309
    %v1121 = vunpack.c.h.b16 %v309
    %v1122 = vunpack.c.l.b16 %v310
    %v1123 = vunpack.c.h.b16 %v310
    %v1124 = vunpack.c.l.b16 %v311
    %v1125 = vunpack.c.h.b16 %v311
    %v1126 = vunpack.c.l.b16 %v312
    %v1127 = vunpack.c.h.b16 %v312
    %v1128 = vunpack.c.l.b16 %v313
    %v1129 = vunpack.c.h.b16 %v313
    %v1130 = vunpack.c.l.b16 %v314
    %v1131 = vunpack.c.h.b16 %v314
    %v1132 = vunpack.c.l.b16 %v315
    %v1133 = vunpack.c.h.b16 %v315
    %v1134 = vunpack.c.l.b16 %v316
    %v1135 = vunpack.c.h.b16 %v316
    %v1136 = vunpack.c.l.b16 %v317
    %v1137 = vunpack.c.h.b16 %v317
    %v1138 = vunpack.c.l.b16 %v318
    %v1139 = vunpack.c.h.b16 %v318
    %v1140 = vunpack.c.l.b16 %v319
    %v1141 = vunpack.c.h.b16 %v319
    %v1142 = vunpack.c.l.b16 %v320
    %v1143 = vunpack.c.h.b16 %v320
    %v1144 = vunpack.c.l.b16 %v321
    %v1145 = vunpack.c.h.b16 %v321
    %v1146 = vunpack.c.l.b16 %v322
    %v1147 = vunpack.c.h.b16 %v322
    %v1148 = vunpack.c.l.b16 %v323
    %v1149 = vunpack.c.h.b16 %v323
    %v1150 = vunpack.c.l.b16 %v324
    %v1151 = vunpack.c.h.b16 %v324
    %v1152 = vunpack.c.l.b16 %v325
    %v1153 = vunpack.c.h.b16 %v325
    %v1154 = vunpack.c.l.b16 %v326
    %v1155 = vunpack.c.h.b16 %v326
    %v1156 = vunpack.c.l.b16 %v327
    %v1157 = vunpack.c.h.b16 %v327
    %v1158 = vunpack.c.l.b16 %v328
    %v1159 = vunpack.c.h.b16 %v328
    %v1160 = vunpack.c.l.b16 %v329
    %v1161 = vunpack.c.h.b16 %v329
    %v1162 = vunpack.c.l.b16 %v330
    %v1163 = vunpack.c.h.b16 %v330
    %v1164 = vunpack.c.l.b16 %v331
    %v1165 = vunpack.c.h.b16 %v331
    %v1166 = vunpack.c.l.b16 %v332
    %v1167 = vunpack.c.h.b16 %v332
    %v1168 = vunpack.c.l.b16 %v333
    %v1169 = vunpack.c.h.b16 %v333
    %v1170 = vunpack.c.l.b16 %v334
    %v1171 = vunpack.c.h.b16 %v334
    %v1172 = vunpack.c.l.b16 %v335
    %v1173 = vunpack.c.h.b16 %v335
    %v1174 = vunpack.c.l.b16 %v336
    %v1175 = vunpack.c.h.b16 %v336
    %v1176 = vunpack.c.l.b16 %v337
    %v1177 = vunpack.c.h.b16 %v337
    %v1178 = vunpack.c.l.b16 %v338
    %v1179 = vunpack.c.h.b16 %v338
    %v1180 = vunpack.c.l.b16 %v339
    %v1181 = vunpack.c.h.b16 %v339
    %v1182 = vunpack.c.l.b16 %v340
    %v1183 = vunpack.c.h.b16 %v340
    %v1184 = vunpack.c.l.b16 %v341
    %v1185 = vunpack.c.h.b16 %v341
    %v1186 = vunpack.c.l.b16 %v342
    %v1187 = vunpack.c.h.b16 %v342
    %v1188 = vunpack.c.l.b16 %v343
    %v1189 = vunpack.c.h.b16 %v343
    %v1190 = vunpack.c.l.b16 %v344
    %v1191 = vunpack.c.h.b16 %v344
    %v1192 = vunpack.c.l.b16 %v345
    %v1193 = vunpack.c.h.b16 %v345
    %v1194 = vunpack.c.l.b16 %v346
    %v1195 = vunpack.c.h.b16 %v346
    %v1196 = vunpack.c.l.b16 %v347
    %v1197 = vunpack.c.h.b16 %v347
    %v1198 = vunpack.c.l.b16 %v348
    %v1199 = vunpack.c.h.b16 %v348
    %v1200 = vunpack.c.l.b16 %v349
    %v1201 = vunpack.c.h.b16 %v349
    %v1202 = vunpack.c.l.b16 %v350
    %v1203 = vunpack.c.h.b16 %v350
    %v1204 = vunpack.c.l.b16 %v351
    %v1205 = vunpack.c.h.b16 %v351
    %v1206 = vunpack.c.l.b16 %v352
    %v1207 = vunpack.c.h.b16 %v352
    %v1208 = vunpack.c.l.b16 %v353
    %v1209 = vunpack.c.h.b16 %v353
    %v1210 = vunpack.c.l.b16 %v354
    %v1211 = vunpack.c.h.b16 %v354
    %v1212 = vunpack.c.l.b16 %v355
    %v1213 = vunpack.c.h.b16 %v355
    %v1214 = vunpack.c.l.b16 %v356
    %v1215 = vunpack.c.h.b16 %v356
    %v1216 = vunpack.c.l.b16 %v357
    %v1217 = vunpack.c.h.b16 %v357
    %v1218 = vunpack.c.l.b16 %v358
    %v1219 = vunpack.c.h.b16 %v358
    %v1220 = vunpack.c.l.b16 %v359
    %v1221 = vunpack.c.h.b16 %v359
    %v1222 = vunpack.c.l.b16 %v360
    %v1223 = vunpack.c.h.b16 %v360
    %v1224 = vunpack.c.l.b16 %v361
    %v1225 = vunpack.c.h.b16 %v361
    %v1226 = vunpack.c.l.b16 %v362
    %v1227 = vunpack.c.h.b16 %v362
    %v1228 = vunpack.c.l.b16 %v363
    %v1229 = vunpack.c.h.b16 %v363
    %v1230 = vunpack.c.l.b16 %v364
    %v1231 = vunpack.c.h.b16 %v364
    %v1232 = vunpack.c.l.b16 %v365
    %v1233 = vunpack.c.h.b16 %v365
    %v1234 = vunpack.c.l.b16 %v366
    %v1235 = vunpack.c.h.b16 %v366
    %v1236 = vunpack.c.l.b16 %v367
    %v1237 = vunpack.c.h.b16 %v367
    %v1238 = vunpack.c.l.b16 %v368
    %v1239 = vunpack.c.h.b16 %v368
    %v1240 = vunpack.c.l.b16 %v369
    %v1241 = vunpack.c.h.b16 %v369
    %v1242 = vunpack.c.l.b16 %v370
    %v1243 = vunpack.c.h.b16 %v370
    %v1244 = vunpack.c.l.b16 %v371
    %v1245 = vunpack.c.h.b16 %v371
    %v1246 = vunpack.c.l.b16 %v372
    %v1247 = vunpack.c.h.b16 %v372
    %v1248 = vunpack.c.l.b16 %v373
    %v1249 = vunpack.c.h.b16 %v373
    %v1250 = vunpack.c.l.b16 %v374
    %v1251 = vunpack.c.h.b16 %v374
    %v1252 = vunpack.c.l.b16 %v375
    %v1253 = vunpack.c.h.b16 %v375
    %v1254 = vunpack.c.l.b16 %v376
    %v1255 = vunpack.c.h.b16 %v376
    %v1256 = vunpack.c.l.b16 %v377
    %v1257 = vunpack.c.h.b16 %v377
    %v1258 = vpack.c.b16 %v694, %v682
    %v1259 = vpack.c.b16 %v695, %v683
    %v1260 = vpack.c.b16 %v696, %v684
    %v1261 = vpack.c.b16 %v697, %v685
    %v1262 = vpack.c.b16 %v698, %v686
    %v1263 = vpack.c.b16 %v699, %v687
    %v1264 = vpack.c.b16 %v700, %v688
    %v1265 = vpack.c.b16 %v701, %v689
    %v1266 = vpack.c.b16 %v702, %v690
    %v1267 = vpack.c.b16 %v703, %v691
    %v1268 = vpack.c.b16 %v704, %v692
    %v1269 = vpack.c.b16 %v705, %v693
    %v1270 = vpack.c.b16 %v718, %v706
    %v1271 = vpack.c.b16 %v719, %v707
    %v1272 = vpack.c.b16 %v720, %v708
    %v1273 = vpack.c.b16 %v721, %v709
    %v1274 = vpack.c.b16 %v722, %v710
    %v1275 = vpack.c.b16 %v723, %v711
    %v1276 = vpack.c.b16 %v724, %v712
    %v1277 = vpack.c.b16 %v725, %v713
    %v1278 = vpack.c.b16 %v726, %v714
    %v1279 = vpack.c.b16 %v727, %v715
    %v1280 = vpack.c.b16 %v728, %v716
    %v1281 = vpack.c.b16 %v729, %v717
    %v1282 = vpack.c.b16 %v742, %v730
    %v1283 = vpack.c.b16 %v743, %v731
    %v1284 = vpack.c.b16 %v744, %v732
    %v1285 = vpack.c.b16 %v745, %v733
    %v1286 = vpack.c.b16 %v746, %v734
    %v1287 = vpack.c.b16 %v747, %v735
    %v1288 = vpack.c.b16 %v748, %v736
    %v1289 = vpack.c.b16 %v749, %v737
    %v1290 = vpack.c.b16 %v750, %v738
    %v1291 = vpack.c.b16 %v751, %v739
    %v1292 = vpack.c.b16 %v752, %v740
    %v1293 = vpack.c.b16 %v753, %v741
    %v1294 = vpack.c.b16 %v766, %v754
    %v1295 = vpack.c.b16 %v767, %v755
    %v1296 = vpack.c.b16 %v768, %v756
    %v1297 = vpack.c.b16 %v769, %v757
    %v1298 = vpack.c.b16 %v770, %v758
    %v1299 = vpack.c.b16 %v771, %v759
    %v1300 = vpack.c.b16 %v772, %v760
    %v1301 = vpack.c.b16 %v773, %v761
    %v1302 = vpack.c.b16 %v774, %v762
    %v1303 = vpack.c.b16 %v775, %v763
    %v1304 = vpack.c.b16 %v776, %v764
    %v1305 = vpack.c.b16 %v777, %v765
    %v1306 = vpack.c.b16 %v790, %v778
    %v1307 = vpack.c.b16 %v791, %v779
    %v1308 = vpack.c.b16 %v792, %v780
    %v1309 = vpack.c.b16 %v793, %v781
    %v1310 = vpack.c.b16 %v794, %v782
    %v1311 = vpack.c.b16 %v795, %v783
    %v1312 = vpack.c.b16 %v796, %v784
    %v1313 = vpack.c.b16 %v797, %v785
    %v1314 = vpack.c.b16 %v798, %v786
    %v1315 = vpack.c.b16 %v799, %v787
    %v1316 = vpack.c.b16 %v800, %v788
    %v1317 = vpack.c.b16 %v801, %v789
    %v1318 = vpack.c.b16 %v814, %v802
    %v1319 = vpack.c.b16 %v815, %v803
    %v1320 = vpack.c.b16 %v816, %v804
    %v1321 = vpack.c.b16 %v817, %v805
    %v1322 = vpack.c.b16 %v818, %v806
    %v1323 = vpack.c.b16 %v819, %v807
    %v1324 = vpack.c.b16 %v820, %v808
    %v1325 = vpack.c.b16 %v821, %v809
    %v1326 = vpack.c.b16 %v822, %v810
    %v1327 = vpack.c.b16 %v823, %v811
    %v1328 = vpack.c.b16 %v824, %v812
    %v1329 = vpack.c.b16 %v825, %v813
    %v1330 = vpack.c.b16 %v838, %v826
    %v1331 = vpack.c.b16 %v839, %v827
    %v1332 = vpack.c.b16 %v840, %v828
    %v1333 = vpack.c.b16 %v841, %v829
    %v1334 = vpack.c.b16 %v842, %v830
    %v1335 = vpack.c.b16 %v843, %v831
    %v1336 = vpack.c.b16 %v844, %v832
    %v1337 = vpack.c.b16 %v845, %v833
    %v1338 = vpack.c.b16 %v846, %v834
    %v1339 = vpack.c.b16 %v847, %v835
    %v1340 = vpack.c.b16 %v848, %v836
    %v1341 = vpack.c.b16 %v849, %v837
    %v1342 = vpack.c.b16 %v862, %v850
    %v1343 = vpack.c.b16 %v863, %v851
    %v1344 = vpack.c.b16 %v864, %v852
    %v1345 = vpack.c.b16 %v865, %v853
    %v1346 = vpack.c.b16 %v866, %v854
    %v1347 = vpack.c.b16 %v867, %v855
    %v1348 = vpack.c.b16 %v868, %v856
    %v1349 = vpack.c.b16 %v869, %v857
    %v1350 = vpack.c.b16 %v870, %v858
    %v1351 = vpack.c.b16 %v871, %v859
    %v1352 = vpack.c.b16 %v872, %v860
    %v1353 = vpack.c.b16 %v873, %v861
    %v1354 = vpack.c.b16 %v886, %v874
    %v1355 = vpack.c.b16 %v887, %v875
    %v1356 = vpack.c.b16 %v888, %v876
    %v1357 = vpack.c.b16 %v889, %v877
    %v1358 = vpack.c.b16 %v890, %v878
    %v1359 = vpack.c.b16 %v891, %v879
    %v1360 = vpack.c.b16 %v892, %v880
    %v1361 = vpack.c.b16 %v893, %v881
    %v1362 = vpack.c.b16 %v894, %v882
    %v1363 = vpack.c.b16 %v895, %v883
    %v1364 = vpack.c.b16 %v896, %v884
    %v1365 = vpack.c.b16 %v897, %v885
    %v1366 = vpack.c.b16 %v910, %v898
    %v1367 = vpack.c.b16 %v911, %v899
    %v1368 = vpack.c.b16 %v912, %v900
    %v1369 = vpack.c.b16 %v913, %v901
    %v1370 = vpack.c.b16 %v914, %v902
    %v1371 = vpack.c.b16 %v915, %v903
    %v1372 = vpack.c.b16 %v916, %v904
    %v1373 = vpack.c.b16 %v917, %v905
    %v1374 = vpack.c.b16 %v918, %v906
    %v1375 = vpack.c.b16 %v919, %v907
    %v1376 = vpack.c.b16 %v920, %v908
    %v1377 = vpack.c.b16 %v921, %v909
    %v1378 = vpack.c.b16 %v934, %v922
    %v1379 = vpack.c.b16 %v935, %v923
    %v1380 = vpack.c.b16 %v936, %v924
    %v1381 = vpack.c.b16 %v937, %v925
    %v1382 = vpack.c.b16 %v938, %v926
    %v1383 = vpack.c.b16 %v939, %v927
    %v1384 = vpack.c.b16 %v940, %v928
    %v1385 = vpack.c.b16 %v941, %v929
    %v1386 = vpack.c.b16 %v942, %v930
    %v1387 = vpack.c.b16 %v943, %v931
    %v1388 = vpack.c.b16 %v944, %v932
    %v1389 = vpack.c.b16 %v945, %v933
    %v1390 = vpack.c.b16 %v958, %v946
    %v1391 = vpack.c.b16 %v959, %v947
    %v1392 = vpack.c.b16 %v960, %v948
    %v1393 = vpack.c.b16 %v961, %v949
    %v1394 = vpack.c.b16 %v962, %v950
    %v1395 = vpack.c.b16 %v963, %v951
    %v1396 = vpack.c.b16 %v964, %v952
    %v1397 = vpack.c.b16 %v965, %v953
    %v1398 = vpack.c.b16 %v966, %v954
    %v1399 = vpack.c.b16 %v967, %v955
    %v1400 = vpack.c.b16 %v968, %v956
    %v1401 = vpack.c.b16 %v969, %v957
    %v1402 = vpack.c.b16 %v982, %v970
    %v1403 = vpack.c.b16 %v983, %v971
    %v1404 = vpack.c.b16 %v984, %v972
    %v1405 = vpack.c.b16 %v985, %v973
    %v1406 = vpack.c.b16 %v986, %v974
    %v1407 = vpack.c.b16 %v987, %v975
    %v1408 = vpack.c.b16 %v988, %v976
    %v1409 = vpack.c.b16 %v989, %v977
    %v1410 = vpack.c.b16 %v990, %v978
    %v1411 = vpack.c.b16 %v991, %v979
    %v1412 = vpack.c.b16 %v992, %v980
    %v1413 = vpack.c.b16 %v993, %v981
    %v1414 = vpack.c.b16 %v1006, %v994
    %v1415 = vpack.c.b16 %v1007, %v995
    %v1416 = vpack.c.b16 %v1008, %v996
    %v1417 = vpack.c.b16 %v1009, %v997
    %v1418 = vpack.c.b16 %v1010, %v998
    %v1419 = vpack.c.b16 %v1011, %v999
    %v1420 = vpack.c.b16 %v1012, %v1000
    %v1421 = vpack.c.b16 %v1013, %v1001
    %v1422 = vpack.c.b16 %v1014, %v1002
    %v1423 = vpack.c.b16 %v1015, %v1003
    %v1424 = vpack.c.b16 %v1016, %v1004
    %v1425 = vpack.c.b16 %v1017, %v1005
    %v1426 = vpack.c.b16 %v1030, %v1018
    %v1427 = vpack.c.b16 %v1031, %v1019
    %v1428 = vpack.c.b16 %v1032, %v1020
    %v1429 = vpack.c.b16 %v1033, %v1021
    %v1430 = vpack.c.b16 %v1034, %v1022
    %v1431 = vpack.c.b16 %v1035, %v1023
    %v1432 = vpack.c.b16 %v1036, %v1024
    %v1433 = vpack.c.b16 %v1037, %v1025
    %v1434 = vpack.c.b16 %v1038, %v1026
    %v1435 = vpack.c.b16 %v1039, %v1027
    %v1436 = vpack.c.b16 %v1040, %v1028
    %v1437 = vpack.c.b16 %v1041, %v1029
    %v1438 = vpack.c.b16 %v1054, %v1042
    %v1439 = vpack.c.b16 %v1055, %v1043
    %v1440 = vpack.c.b16 %v1056, %v1044
    %v1441 = vpack.c.b16 %v1057, %v1045
    %v1442 = vpack.c.b16 %v1058, %v1046
    %v1443 = vpack.c.b16 %v1059, %v1047
    %v1444 = vpack.c.b16 %v1060, %v1048
    %v1445 = vpack.c.b16 %v1061, %v1049
    %v1446 = vpack.c.b16 %v1062, %v1050
    %v1447 = vpack.c.b16 %v1063, %v1051
    %v1448 = vpack.c.b16 %v1064, %v1052
    %v1449 = vpack.c.b16 %v1065, %v1053
    %v1450 = vpack.c.b16 %v1078, %v1066
    %v1451 = vpack.c.b16 %v1079, %v1067
    %v1452 = vpack.c.b16 %v1080, %v1068
    %v1453 = vpack.c.b16 %v1081, %v1069
    %v1454 = vpack.c.b16 %v1082, %v1070
    %v1455 = vpack.c.b16 %v1083, %v1071
    %v1456 = vpack.c.b16 %v1084, %v1072
    %v1457 = vpack.c.b16 %v1085, %v1073
    %v1458 = vpack.c.b16 %v1086, %v1074
    %v1459 = vpack.c.b16 %v1087, %v1075
    %v1460 = vpack.c.b16 %v1088, %v1076
    %v1461 = vpack.c.b16 %v1089, %v1077
    %v1462 = vpack.c.b16 %v1102, %v1090
    %v1463 = vpack.c.b16 %v1103, %v1091
    %v1464 = vpack.c.b16 %v1104, %v1092
    %v1465 = vpack.c.b16 %v1105, %v1093
    %v1466 = vpack.c.b16 %v1106, %v1094
    %v1467 = vpack.c.b16 %v1107, %v1095
    %v1468 = vpack.c.b16 %v1108, %v1096
    %v1469 = vpack.c.b16 %v1109, %v1097
    %v1470 = vpack.c.b16 %v1110, %v1098
    %v1471 = vpack.c.b16 %v1111, %v1099
    %v1472 = vpack.c.b16 %v1112, %v1100
    %v1473 = vpack.c.b16 %v1113, %v1101
    %v1474 = vpack.c.b16 %v1126, %v1114
    %v1475 = vpack.c.b16 %v1127, %v1115
    %v1476 = vpack.c.b16 %v1128, %v1116
    %v1477 = vpack.c.b16 %v1129, %v1117
    %v1478 = vpack.c.b16 %v1130, %v1118
    %v1479 = vpack.c.b16 %v1131, %v1119
    %v1480 = vpack.c.b16 %v1132, %v1120
    %v1481 = vpack.c.b16 %v1133, %v1121
    %v1482 = vpack.c.b16 %v1134, %v1122
    %v1483 = vpack.c.b16 %v1135, %v1123
    %v1484 = vpack.c.b16 %v1136, %v1124
    %v1485 = vpack.c.b16 %v1137, %v1125
    %v1486 = vpack.c.b16 %v1150, %v1138
    %v1487 = vpack.c.b16 %v1151, %v1139
    %v1488 = vpack.c.b16 %v1152, %v1140
    %v1489 = vpack.c.b16 %v1153, %v1141
    %v1490 = vpack.c.b16 %v1154, %v1142
    %v1491 = vpack.c.b16 %v1155, %v1143
    %v1492 = vpack.c.b16 %v1156, %v1144
    %v1493 = vpack.c.b16 %v1157, %v1145
    %v1494 = vpack.c.b16 %v1158, %v1146
    %v1495 = vpack.c.b16 %v1159, %v1147
    %v1496 = vpack.c.b16 %v1160, %v1148
    %v1497 = vpack.c.b16 %v1161, %v1149
    %v1498 = vpack.c.b16 %v1174, %v1162
    %v1499 = vpack.c.b16 %v1175, %v1163
    %v1500 = vpack.c.b16 %v1176, %v1164
    %v1501 = vpack.c.b16 %v1177, %v1165
    %v1502 = vpack.c.b16 %v1178, %v1166
    %v1503 = vpack.c.b16 %v1179, %v1167
    %v1504 = vpack.c.b16 %v1180, %v1168
    %v1505 = vpack.c.b16 %v1181, %v1169
    %v1506 = vpack.c.b16 %v1182, %v1170
    %v1507 = vpack.c.b16 %v1183, %v1171
    %v1508 = vpack.c.b16 %v1184, %v1172
    %v1509 = vpack.c.b16 %v1185, %v1173
    %v1510 = vpack.c.b16 %v1198, %v1186
    %v1511 = vpack.c.b16 %v1199, %v1187
    %v1512 = vpack.c.b16 %v1200, %v1188
    %v1513 = vpack.c.b16 %v1201, %v1189
    %v1514 = vpack.c.b16 %v1202, %v1190
    %v1515 = vpack.c.b16 %v1203, %v1191
    %v1516 = vpack.c.b16 %v1204, %v1192
    %v1517 = vpack.c.b16 %v1205, %v1193
    %v1518 = vpack.c.b16 %v1206, %v1194
    %v1519 = vpack.c.b16 %v1207, %v1195
    %v1520 = vpack.c.b16 %v1208, %v1196
    %v1521 = vpack.c.b16 %v1209, %v1197
    %v1522 = vpack.c.b16 %v1222, %v1210
    %v1523 = vpack.c.b16 %v1223, %v1211
    %v1524 = vpack.c.b16 %v1224, %v1212
    %v1525 = vpack.c.b16 %v1225, %v1213
    %v1526 = vpack.c.b16 %v1226, %v1214
    %v1527 = vpack.c.b16 %v1227, %v1215
    %v1528 = vpack.c.b16 %v1228, %v1216
    %v1529 = vpack.c.b16 %v1229, %v1217
    %v1530 = vpack.c.b16 %v1230, %v1218
    %v1531 = vpack.c.b16 %v1231, %v1219
    %v1532 = vpack.c.b16 %v1232, %v1220
    %v1533 = vpack.c.b16 %v1233, %v1221
    %v1534 = vpack.c.b16 %v1246, %v1234
    %v1535 = vpack.c.b16 %v1247, %v1235
    %v1536 = vpack.c.b16 %v1248, %v1236
    %v1537 = vpack.c.b16 %v1249, %v1237
    %v1538 = vpack.c.b16 %v1250, %v1238
    %v1539 = vpack.c.b16 %v1251, %v1239
    %v1540 = vpack.c.b16 %v1252, %v1240
    %v1541 = vpack.c.b16 %v1253, %v1241
    %v1542 = vpack.c.b16 %v1254, %v1242
    %v1543 = vpack.c.b16 %v1255, %v1243
    %v1544 = vpack.c.b16 %v1256, %v1244
    %v1545 = vpack.c.b16 %v1257, %v1245
    %1834 = vmatprep.subr.bf16.mxu0 %v1259
    %1835 = vmatpush1.bf16.msra.mxu0 %v1258
    %1836 = vmatprep.subr.bf16.mxu0 %v1271
    %1837 = vmatpush1.bf16.msra.mxu0 %v1270
    %1838 = vmatprep.subr.bf16.mxu0 %v1283
    %1839 = vmatpush1.bf16.msra.mxu0 %v1282
    %1840 = vmatprep.subr.bf16.mxu0 %v1295
    %1841 = vmatpush1.bf16.msra.mxu0 %v1294
    %1842 = vmatprep.subr.bf16.mxu0 %v1307
    %1843 = vmatpush1.bf16.msra.mxu0 %v1306
    %1844 = vmatprep.subr.bf16.mxu0 %v1319
    %1845 = vmatpush1.bf16.msra.mxu0 %v1318
    %1846 = vmatprep.subr.bf16.mxu0 %v1331
    %1847 = vmatpush1.bf16.msra.mxu0 %v1330
    %1848 = vmatprep.subr.bf16.mxu0 %v1343
    %1849 = vmatpush1.bf16.msra.mxu0 %v1342
    %1850 = vmatprep.subr.bf16.mxu0 %v1355
    %1851 = vmatpush1.bf16.msra.mxu0 %v1354
    %1852 = vmatprep.subr.bf16.mxu0 %v1367
    %1853 = vmatpush1.bf16.msra.mxu0 %v1366
    %1854 = vmatprep.subr.bf16.mxu0 %v1379
    %1855 = vmatpush1.bf16.msra.mxu0 %v1378
    %1856 = vmatprep.subr.bf16.mxu0 %v1391
    %1857 = vmatpush1.bf16.msra.mxu0 %v1390
    %1858 = vmatprep.subr.bf16.mxu0 %v1403
    %1859 = vmatpush1.bf16.msra.mxu0 %v1402
    %1860 = vmatprep.subr.bf16.mxu0 %v1415
    %1861 = vmatpush1.bf16.msra.mxu0 %v1414
    %1862 = vmatprep.subr.bf16.mxu0 %v1427
    %1863 = vmatpush1.bf16.msra.mxu0 %v1426
    %1864 = vmatprep.subr.bf16.mxu0 %v1439
    %1865 = vmatpush1.bf16.msra.mxu0 %v1438
    %1866 = vmatprep.mubr.bf16.mxu0 %v389
    %1867 = vmatmul.mubr.bf16.gmra.mrb[0].mxu0 %v388
    %v1868 = vpop.f32.mrb[0].mxu0
    %v1869 = vadd.f32 0.0, %v1868
    %v1870 = vpop.f32.mrb[0].mxu0
    %v1871 = vadd.f32 0.0, %v1870
    %v1872 = vpop.f32.mrb[0].mxu0
    %v1873 = vadd.f32 0.0, %v1872
    %v1874 = vpop.f32.mrb[0].mxu0
    %v1875 = vadd.f32 0.0, %v1874
    %1876 = vdwg.mxu0
    %1877 = vmatprep.subr.bf16.mxu0 %v1451
    %1878 = vmatpush1.bf16.msra.mxu0 %v1450
    %1879 = vmatprep.subr.bf16.mxu0 %v1463
    %1880 = vmatpush1.bf16.msra.mxu0 %v1462
    %1881 = vmatprep.subr.bf16.mxu0 %v1475
    %1882 = vmatpush1.bf16.msra.mxu0 %v1474
    %1883 = vmatprep.subr.bf16.mxu0 %v1487
    %1884 = vmatpush1.bf16.msra.mxu0 %v1486
    %1885 = vmatprep.subr.bf16.mxu0 %v1499
    %1886 = vmatpush1.bf16.msra.mxu0 %v1498
    %1887 = vmatprep.subr.bf16.mxu0 %v1511
    %1888 = vmatpush1.bf16.msra.mxu0 %v1510
    %1889 = vmatprep.subr.bf16.mxu0 %v1523
    %1890 = vmatpush1.bf16.msra.mxu0 %v1522
    %1891 = vmatprep.subr.bf16.mxu0 %v1535
    %1892 = vmatpush1.bf16.msra.mxu0 %v1534
    %1893 = vmatprep.subr.bf16.mxu0 0
    %1894 = vmatpush1.bf16.msra.mxu0 0
    %1895 = vmatprep.subr.bf16.mxu0 0
    %1896 = vmatpush1.bf16.msra.mxu0 0
    %1897 = vmatprep.subr.bf16.mxu0 0
    %1898 = vmatpush1.bf16.msra.mxu0 0
    %1899 = vmatprep.subr.bf16.mxu0 0
    %1900 = vmatpush1.bf16.msra.mxu0 0
    %1901 = vmatprep.subr.bf16.mxu0 0
    %1902 = vmatpush1.bf16.msra.mxu0 0
    %1903 = vmatprep.subr.bf16.mxu0 0
    %1904 = vmatpush1.bf16.msra.mxu0 0
    %1905 = vmatprep.subr.bf16.mxu0 0
    %1906 = vmatpush1.bf16.msra.mxu0 0
    %1907 = vmatprep.subr.bf16.mxu0 0
    %1908 = vmatpush1.bf16.msra.mxu0 0
    %1909 = vmatprep.mubr.bf16.mxu0 0
    %1910 = vmatmul.mubr.bf16.gmra.mrb[0].mxu0 %v390
    %v1911 = vpop.f32.mrb[0].mxu0
    %v1912 = vadd.f32 %v1869, %v1911
    %v1913 = vpop.f32.mrb[0].mxu0
    %v1914 = vadd.f32 %v1871, %v1913
    %v1915 = vpop.f32.mrb[0].mxu0
    %v1916 = vadd.f32 %v1873, %v1915
    %v1917 = vpop.f32.mrb[0].mxu0
    %v1918 = vadd.f32 %v1875, %v1917
    %1919 = vdwg.mxu0
    %1920 = vmatprep.subr.bf16.mxu0 %v1261
    %1921 = vmatpush1.bf16.msra.mxu0 %v1260
    %1922 = vmatprep.subr.bf16.mxu0 %v1273
    %1923 = vmatpush1.bf16.msra.mxu0 %v1272
    %1924 = vmatprep.subr.bf16.mxu0 %v1285
    %1925 = vmatpush1.bf16.msra.mxu0 %v1284
    %1926 = vmatprep.subr.bf16.mxu0 %v1297
    %1927 = vmatpush1.bf16.msra.mxu0 %v1296
    %1928 = vmatprep.subr.bf16.mxu0 %v1309
    %1929 = vmatpush1.bf16.msra.mxu0 %v1308
    %1930 = vmatprep.subr.bf16.mxu0 %v1321
    %1931 = vmatpush1.bf16.msra.mxu0 %v1320
    %1932 = vmatprep.subr.bf16.mxu0 %v1333
    %1933 = vmatpush1.bf16.msra.mxu0 %v1332
    %1934 = vmatprep.subr.bf16.mxu0 %v1345
    %1935 = vmatpush1.bf16.msra.mxu0 %v1344
    %1936 = vmatprep.subr.bf16.mxu0 %v1357
    %1937 = vmatpush1.bf16.msra.mxu0 %v1356
    %1938 = vmatprep.subr.bf16.mxu0 %v1369
    %1939 = vmatpush1.bf16.msra.mxu0 %v1368
    %1940 = vmatprep.subr.bf16.mxu0 %v1381
    %1941 = vmatpush1.bf16.msra.mxu0 %v1380
    %1942 = vmatprep.subr.bf16.mxu0 %v1393
    %1943 = vmatpush1.bf16.msra.mxu0 %v1392
    %1944 = vmatprep.subr.bf16.mxu0 %v1405
    %1945 = vmatpush1.bf16.msra.mxu0 %v1404
    %1946 = vmatprep.subr.bf16.mxu0 %v1417
    %1947 = vmatpush1.bf16.msra.mxu0 %v1416
    %1948 = vmatprep.subr.bf16.mxu0 %v1429
    %1949 = vmatpush1.bf16.msra.mxu0 %v1428
    %1950 = vmatprep.subr.bf16.mxu0 %v1441
    %1951 = vmatpush1.bf16.msra.mxu0 %v1440
    %1952 = vmatprep.mubr.bf16.mxu0 %v389
    %1953 = vmatmul.mubr.bf16.gmra.mrb[0].mxu0 %v388
    %v1954 = vpop.f32.mrb[0].mxu0
    %v1955 = vadd.f32 0.0, %v1954
    %v1956 = vpop.f32.mrb[0].mxu0
    %v1957 = vadd.f32 0.0, %v1956
    %v1958 = vpop.f32.mrb[0].mxu0
    %v1959 = vadd.f32 0.0, %v1958
    %v1960 = vpop.f32.mrb[0].mxu0
    %v1961 = vadd.f32 0.0, %v1960
    %1962 = vdwg.mxu0
    %1963 = vmatprep.subr.bf16.mxu0 %v1453
    %1964 = vmatpush1.bf16.msra.mxu0 %v1452
    %1965 = vmatprep.subr.bf16.mxu0 %v1465
    %1966 = vmatpush1.bf16.msra.mxu0 %v1464
    %1967 = vmatprep.subr.bf16.mxu0 %v1477
    %1968 = vmatpush1.bf16.msra.mxu0 %v1476
    %1969 = vmatprep.subr.bf16.mxu0 %v1489
    %1970 = vmatpush1.bf16.msra.mxu0 %v1488
    %1971 = vmatprep.subr.bf16.mxu0 %v1501
    %1972 = vmatpush1.bf16.msra.mxu0 %v1500
    %1973 = vmatprep.subr.bf16.mxu0 %v1513
    %1974 = vmatpush1.bf16.msra.mxu0 %v1512
    %1975 = vmatprep.subr.bf16.mxu0 %v1525
    %1976 = vmatpush1.bf16.msra.mxu0 %v1524
    %1977 = vmatprep.subr.bf16.mxu0 %v1537
    %1978 = vmatpush1.bf16.msra.mxu0 %v1536
    %1979 = vmatprep.subr.bf16.mxu0 0
    %1980 = vmatpush1.bf16.msra.mxu0 0
    %1981 = vmatprep.subr.bf16.mxu0 0
    %1982 = vmatpush1.bf16.msra.mxu0 0
    %1983 = vmatprep.subr.bf16.mxu0 0
    %1984 = vmatpush1.bf16.msra.mxu0 0
    %1985 = vmatprep.subr.bf16.mxu0 0
    %1986 = vmatpush1.bf16.msra.mxu0 0
    %1987 = vmatprep.subr.bf16.mxu0 0
    %1988 = vmatpush1.bf16.msra.mxu0 0
    %1989 = vmatprep.subr.bf16.mxu0 0
    %1990 = vmatpush1.bf16.msra.mxu0 0
    %1991 = vmatprep.subr.bf16.mxu0 0
    %1992 = vmatpush1.bf16.msra.mxu0 0
    %1993 = vmatprep.subr.bf16.mxu0 0
    %1994 = vmatpush1.bf16.msra.mxu0 0
    %1995 = vmatprep.mubr.bf16.mxu0 0
    %1996 = vmatmul.mubr.bf16.gmra.mrb[0].mxu0 %v390
    %v1997 = vpop.f32.mrb[0].mxu0
    %v1998 = vadd.f32 %v1955, %v1997
    %v1999 = vpop.f32.mrb[0].mxu0
    %v2000 = vadd.f32 %v1957, %v1999
    %v2001 = vpop.f32.mrb[0].mxu0
    %v2002 = vadd.f32 %v1959, %v2001
    %v2003 = vpop.f32.mrb[0].mxu0
    %v2004 = vadd.f32 %v1961, %v2003
    %2005 = vdwg.mxu0
    %2006 = vmatprep.subr.bf16.mxu0 %v1263
    %2007 = vmatpush1.bf16.msra.mxu0 %v1262
    %2008 = vmatprep.subr.bf16.mxu0 %v1275
    %2009 = vmatpush1.bf16.msra.mxu0 %v1274
    %2010 = vmatprep.subr.bf16.mxu0 %v1287
    %2011 = vmatpush1.bf16.msra.mxu0 %v1286
    %2012 = vmatprep.subr.bf16.mxu0 %v1299
    %2013 = vmatpush1.bf16.msra.mxu0 %v1298
    %2014 = vmatprep.subr.bf16.mxu0 %v1311
    %2015 = vmatpush1.bf16.msra.mxu0 %v1310
    %2016 = vmatprep.subr.bf16.mxu0 %v1323
    %2017 = vmatpush1.bf16.msra.mxu0 %v1322
    %2018 = vmatprep.subr.bf16.mxu0 %v1335
    %2019 = vmatpush1.bf16.msra.mxu0 %v1334
    %2020 = vmatprep.subr.bf16.mxu0 %v1347
    %2021 = vmatpush1.bf16.msra.mxu0 %v1346
    %2022 = vmatprep.subr.bf16.mxu0 %v1359
    %2023 = vmatpush1.bf16.msra.mxu0 %v1358
    %2024 = vmatprep.subr.bf16.mxu0 %v1371
    %2025 = vmatpush1.bf16.msra.mxu0 %v1370
    %2026 = vmatprep.subr.bf16.mxu0 %v1383
    %2027 = vmatpush1.bf16.msra.mxu0 %v1382
    %2028 = vmatprep.subr.bf16.mxu0 %v1395
    %2029 = vmatpush1.bf16.msra.mxu0 %v1394
    %2030 = vmatprep.subr.bf16.mxu0 %v1407
    %2031 = vmatpush1.bf16.msra.mxu0 %v1406
    %2032 = vmatprep.subr.bf16.mxu0 %v1419
    %2033 = vmatpush1.bf16.msra.mxu0 %v1418
    %2034 = vmatprep.subr.bf16.mxu0 %v1431
    %2035 = vmatpush1.bf16.msra.mxu0 %v1430
    %2036 = vmatprep.subr.bf16.mxu0 %v1443
    %2037 = vmatpush1.bf16.msra.mxu0 %v1442
    %2038 = vmatprep.mubr.bf16.mxu0 %v389
    %2039 = vmatmul.mubr.bf16.gmra.mrb[0].mxu0 %v388
    %v2040 = vpop.f32.mrb[0].mxu0
    %v2041 = vadd.f32 0.0, %v2040
    %v2042 = vpop.f32.mrb[0].mxu0
    %v2043 = vadd.f32 0.0, %v2042
    %v2044 = vpop.f32.mrb[0].mxu0
    %v2045 = vadd.f32 0.0, %v2044
    %v2046 = vpop.f32.mrb[0].mxu0
    %v2047 = vadd.f32 0.0, %v2046
    %2048 = vdwg.mxu0
    %2049 = vmatprep.subr.bf16.mxu0 %v1455
    %2050 = vmatpush1.bf16.msra.mxu0 %v1454
    %2051 = vmatprep.subr.bf16.mxu0 %v1467
    %2052 = vmatpush1.bf16.msra.mxu0 %v1466
    %2053 = vmatprep.subr.bf16.mxu0 %v1479
    %2054 = vmatpush1.bf16.msra.mxu0 %v1478
    %2055 = vmatprep.subr.bf16.mxu0 %v1491
    %2056 = vmatpush1.bf16.msra.mxu0 %v1490
    %2057 = vmatprep.subr.bf16.mxu0 %v1503
    %2058 = vmatpush1.bf16.msra.mxu0 %v1502
    %2059 = vmatprep.subr.bf16.mxu0 %v1515
    %2060 = vmatpush1.bf16.msra.mxu0 %v1514
    %2061 = vmatprep.subr.bf16.mxu0 %v1527
    %2062 = vmatpush1.bf16.msra.mxu0 %v1526
    %2063 = vmatprep.subr.bf16.mxu0 %v1539
    %2064 = vmatpush1.bf16.msra.mxu0 %v1538
    %2065 = vmatprep.subr.bf16.mxu0 0
    %2066 = vmatpush1.bf16.msra.mxu0 0
    %2067 = vmatprep.subr.bf16.mxu0 0
    %2068 = vmatpush1.bf16.msra.mxu0 0
    %2069 = vmatprep.subr.bf16.mxu0 0
    %2070 = vmatpush1.bf16.msra.mxu0 0
    %2071 = vmatprep.subr.bf16.mxu0 0
    %2072 = vmatpush1.bf16.msra.mxu0 0
    %2073 = vmatprep.subr.bf16.mxu0 0
    %2074 = vmatpush1.bf16.msra.mxu0 0
    %2075 = vmatprep.subr.bf16.mxu0 0
    %2076 = vmatpush1.bf16.msra.mxu0 0
    %2077 = vmatprep.subr.bf16.mxu0 0
    %2078 = vmatpush1.bf16.msra.mxu0 0
    %2079 = vmatprep.subr.bf16.mxu0 0
    %2080 = vmatpush1.bf16.msra.mxu0 0
    %2081 = vmatprep.mubr.bf16.mxu0 0
    %2082 = vmatmul.mubr.bf16.gmra.mrb[0].mxu0 %v390
    %v2083 = vpop.f32.mrb[0].mxu0
    %v2084 = vadd.f32 %v2041, %v2083
    %v2085 = vpop.f32.mrb[0].mxu0
    %v2086 = vadd.f32 %v2043, %v2085
    %v2087 = vpop.f32.mrb[0].mxu0
    %v2088 = vadd.f32 %v2045, %v2087
    %v2089 = vpop.f32.mrb[0].mxu0
    %v2090 = vadd.f32 %v2047, %v2089
    %2091 = vdwg.mxu0
    %2092 = vmatprep.subr.bf16.mxu0 %v1265
    %2093 = vmatpush1.bf16.msra.mxu0 %v1264
    %2094 = vmatprep.subr.bf16.mxu0 %v1277
    %2095 = vmatpush1.bf16.msra.mxu0 %v1276
    %2096 = vmatprep.subr.bf16.mxu0 %v1289
    %2097 = vmatpush1.bf16.msra.mxu0 %v1288
    %2098 = vmatprep.subr.bf16.mxu0 %v1301
    %2099 = vmatpush1.bf16.msra.mxu0 %v1300
    %2100 = vmatprep.subr.bf16.mxu0 %v1313
    %2101 = vmatpush1.bf16.msra.mxu0 %v1312
    %2102 = vmatprep.subr.bf16.mxu0 %v1325
    %2103 = vmatpush1.bf16.msra.mxu0 %v1324
    %2104 = vmatprep.subr.bf16.mxu0 %v1337
    %2105 = vmatpush1.bf16.msra.mxu0 %v1336
    %2106 = vmatprep.subr.bf16.mxu0 %v1349
    %2107 = vmatpush1.bf16.msra.mxu0 %v1348
    %2108 = vmatprep.subr.bf16.mxu0 %v1361
    %2109 = vmatpush1.bf16.msra.mxu0 %v1360
    %2110 = vmatprep.subr.bf16.mxu0 %v1373
    %2111 = vmatpush1.bf16.msra.mxu0 %v1372
    %2112 = vmatprep.subr.bf16.mxu0 %v1385
    %2113 = vmatpush1.bf16.msra.mxu0 %v1384
    %2114 = vmatprep.subr.bf16.mxu0 %v1397
    %2115 = vmatpush1.bf16.msra.mxu0 %v1396
    %2116 = vmatprep.subr.bf16.mxu0 %v1409
    %2117 = vmatpush1.bf16.msra.mxu0 %v1408
    %2118 = vmatprep.subr.bf16.mxu0 %v1421
    %2119 = vmatpush1.bf16.msra.mxu0 %v1420
    %2120 = vmatprep.subr.bf16.mxu0 %v1433
    %2121 = vmatpush1.bf16.msra.mxu0 %v1432
    %2122 = vmatprep.subr.bf16.mxu0 %v1445
    %2123 = vmatpush1.bf16.msra.mxu0 %v1444
    %2124 = vmatprep.mubr.bf16.mxu0 %v389
    %2125 = vmatmul.mubr.bf16.gmra.mrb[0].mxu0 %v388
    %v2126 = vpop.f32.mrb[0].mxu0
    %v2127 = vadd.f32 0.0, %v2126
    %v2128 = vpop.f32.mrb[0].mxu0
    %v2129 = vadd.f32 0.0, %v2128
    %v2130 = vpop.f32.mrb[0].mxu0
    %v2131 = vadd.f32 0.0, %v2130
    %v2132 = vpop.f32.mrb[0].mxu0
    %v2133 = vadd.f32 0.0, %v2132
    %2134 = vdwg.mxu0
    %2135 = vmatprep.subr.bf16.mxu0 %v1457
    %2136 = vmatpush1.bf16.msra.mxu0 %v1456
    %2137 = vmatprep.subr.bf16.mxu0 %v1469
    %2138 = vmatpush1.bf16.msra.mxu0 %v1468
    %2139 = vmatprep.subr.bf16.mxu0 %v1481
    %2140 = vmatpush1.bf16.msra.mxu0 %v1480
    %2141 = vmatprep.subr.bf16.mxu0 %v1493
    %2142 = vmatpush1.bf16.msra.mxu0 %v1492
    %2143 = vmatprep.subr.bf16.mxu0 %v1505
    %2144 = vmatpush1.bf16.msra.mxu0 %v1504
    %2145 = vmatprep.subr.bf16.mxu0 %v1517
    %2146 = vmatpush1.bf16.msra.mxu0 %v1516
    %2147 = vmatprep.subr.bf16.mxu0 %v1529
    %2148 = vmatpush1.bf16.msra.mxu0 %v1528
    %2149 = vmatprep.subr.bf16.mxu0 %v1541
    %2150 = vmatpush1.bf16.msra.mxu0 %v1540
    %2151 = vmatprep.subr.bf16.mxu0 0
    %2152 = vmatpush1.bf16.msra.mxu0 0
    %2153 = vmatprep.subr.bf16.mxu0 0
    %2154 = vmatpush1.bf16.msra.mxu0 0
    %2155 = vmatprep.subr.bf16.mxu0 0
    %2156 = vmatpush1.bf16.msra.mxu0 0
    %2157 = vmatprep.subr.bf16.mxu0 0
    %2158 = vmatpush1.bf16.msra.mxu0 0
    %2159 = vmatprep.subr.bf16.mxu0 0
    %2160 = vmatpush1.bf16.msra.mxu0 0
    %2161 = vmatprep.subr.bf16.mxu0 0
    %2162 = vmatpush1.bf16.msra.mxu0 0
    %2163 = vmatprep.subr.bf16.mxu0 0
    %2164 = vmatpush1.bf16.msra.mxu0 0
    %2165 = vmatprep.subr.bf16.mxu0 0
    %2166 = vmatpush1.bf16.msra.mxu0 0
    %2167 = vmatprep.mubr.bf16.mxu0 0
    %2168 = vmatmul.mubr.bf16.gmra.mrb[0].mxu0 %v390
    %v2169 = vpop.f32.mrb[0].mxu0
    %v2170 = vadd.f32 %v2127, %v2169
    %v2171 = vpop.f32.mrb[0].mxu0
    %v2172 = vadd.f32 %v2129, %v2171
    %v2173 = vpop.f32.mrb[0].mxu0
    %v2174 = vadd.f32 %v2131, %v2173
    %v2175 = vpop.f32.mrb[0].mxu0
    %v2176 = vadd.f32 %v2133, %v2175
    %2177 = vdwg.mxu0
    %2178 = vmatprep.subr.bf16.mxu0 %v1267
    %2179 = vmatpush1.bf16.msra.mxu0 %v1266
    %2180 = vmatprep.subr.bf16.mxu0 %v1279
    %2181 = vmatpush1.bf16.msra.mxu0 %v1278
    %2182 = vmatprep.subr.bf16.mxu0 %v1291
    %2183 = vmatpush1.bf16.msra.mxu0 %v1290
    %2184 = vmatprep.subr.bf16.mxu0 %v1303
    %2185 = vmatpush1.bf16.msra.mxu0 %v1302
    %2186 = vmatprep.subr.bf16.mxu0 %v1315
    %2187 = vmatpush1.bf16.msra.mxu0 %v1314
    %2188 = vmatprep.subr.bf16.mxu0 %v1327
    %2189 = vmatpush1.bf16.msra.mxu0 %v1326
    %2190 = vmatprep.subr.bf16.mxu0 %v1339
    %2191 = vmatpush1.bf16.msra.mxu0 %v1338
    %2192 = vmatprep.subr.bf16.mxu0 %v1351
    %2193 = vmatpush1.bf16.msra.mxu0 %v1350
    %2194 = vmatprep.subr.bf16.mxu0 %v1363
    %2195 = vmatpush1.bf16.msra.mxu0 %v1362
    %2196 = vmatprep.subr.bf16.mxu0 %v1375
    %2197 = vmatpush1.bf16.msra.mxu0 %v1374
    %2198 = vmatprep.subr.bf16.mxu0 %v1387
    %2199 = vmatpush1.bf16.msra.mxu0 %v1386
    %2200 = vmatprep.subr.bf16.mxu0 %v1399
    %2201 = vmatpush1.bf16.msra.mxu0 %v1398
    %2202 = vmatprep.subr.bf16.mxu0 %v1411
    %2203 = vmatpush1.bf16.msra.mxu0 %v1410
    %2204 = vmatprep.subr.bf16.mxu0 %v1423
    %2205 = vmatpush1.bf16.msra.mxu0 %v1422
    %2206 = vmatprep.subr.bf16.mxu0 %v1435
    %2207 = vmatpush1.bf16.msra.mxu0 %v1434
    %2208 = vmatprep.subr.bf16.mxu0 %v1447
    %2209 = vmatpush1.bf16.msra.mxu0 %v1446
    %2210 = vmatprep.mubr.bf16.mxu0 %v389
    %2211 = vmatmul.mubr.bf16.gmra.mrb[0].mxu0 %v388
    %v2212 = vpop.f32.mrb[0].mxu0
    %v2213 = vadd.f32 0.0, %v2212
    %v2214 = vpop.f32.mrb[0].mxu0
    %v2215 = vadd.f32 0.0, %v2214
    %v2216 = vpop.f32.mrb[0].mxu0
    %v2217 = vadd.f32 0.0, %v2216
    %v2218 = vpop.f32.mrb[0].mxu0
    %v2219 = vadd.f32 0.0, %v2218
    %2220 = vdwg.mxu0
    %2221 = vmatprep.subr.bf16.mxu0 %v1459
    %2222 = vmatpush1.bf16.msra.mxu0 %v1458
    %2223 = vmatprep.subr.bf16.mxu0 %v1471
    %2224 = vmatpush1.bf16.msra.mxu0 %v1470
    %2225 = vmatprep.subr.bf16.mxu0 %v1483
    %2226 = vmatpush1.bf16.msra.mxu0 %v1482
    %2227 = vmatprep.subr.bf16.mxu0 %v1495
    %2228 = vmatpush1.bf16.msra.mxu0 %v1494
    %2229 = vmatprep.subr.bf16.mxu0 %v1507
    %2230 = vmatpush1.bf16.msra.mxu0 %v1506
    %2231 = vmatprep.subr.bf16.mxu0 %v1519
    %2232 = vmatpush1.bf16.msra.mxu0 %v1518
    %2233 = vmatprep.subr.bf16.mxu0 %v1531
    %2234 = vmatpush1.bf16.msra.mxu0 %v1530
    %2235 = vmatprep.subr.bf16.mxu0 %v1543
    %2236 = vmatpush1.bf16.msra.mxu0 %v1542
    %2237 = vmatprep.subr.bf16.mxu0 0
    %2238 = vmatpush1.bf16.msra.mxu0 0
    %2239 = vmatprep.subr.bf16.mxu0 0
    %2240 = vmatpush1.bf16.msra.mxu0 0
    %2241 = vmatprep.subr.bf16.mxu0 0
    %2242 = vmatpush1.bf16.msra.mxu0 0
    %2243 = vmatprep.subr.bf16.mxu0 0
    %2244 = vmatpush1.bf16.msra.mxu0 0
    %2245 = vmatprep.subr.bf16.mxu0 0
    %2246 = vmatpush1.bf16.msra.mxu0 0
    %2247 = vmatprep.subr.bf16.mxu0 0
    %2248 = vmatpush1.bf16.msra.mxu0 0
    %2249 = vmatprep.subr.bf16.mxu0 0
    %2250 = vmatpush1.bf16.msra.mxu0 0
    %2251 = vmatprep.subr.bf16.mxu0 0
    %2252 = vmatpush1.bf16.msra.mxu0 0
    %2253 = vmatprep.mubr.bf16.mxu0 0
    %2254 = vmatmul.mubr.bf16.gmra.mrb[0].mxu0 %v390
    %v2255 = vpop.f32.mrb[0].mxu0
    %v2256 = vadd.f32 %v2213, %v2255
    %v2257 = vpop.f32.mrb[0].mxu0
    %v2258 = vadd.f32 %v2215, %v2257
    %v2259 = vpop.f32.mrb[0].mxu0
    %v2260 = vadd.f32 %v2217, %v2259
    %v2261 = vpop.f32.mrb[0].mxu0
    %v2262 = vadd.f32 %v2219, %v2261
    %2263 = vdwg.mxu0
    %2264 = vmatprep.subr.bf16.mxu0 %v1269
    %2265 = vmatpush1.bf16.msra.mxu0 %v1268
    %2266 = vmatprep.subr.bf16.mxu0 %v1281
    %2267 = vmatpush1.bf16.msra.mxu0 %v1280
    %2268 = vmatprep.subr.bf16.mxu0 %v1293
    %2269 = vmatpush1.bf16.msra.mxu0 %v1292
    %2270 = vmatprep.subr.bf16.mxu0 %v1305
    %2271 = vmatpush1.bf16.msra.mxu0 %v1304
    %2272 = vmatprep.subr.bf16.mxu0 %v1317
    %2273 = vmatpush1.bf16.msra.mxu0 %v1316
    %2274 = vmatprep.subr.bf16.mxu0 %v1329
    %2275 = vmatpush1.bf16.msra.mxu0 %v1328
    %2276 = vmatprep.subr.bf16.mxu0 %v1341
    %2277 = vmatpush1.bf16.msra.mxu0 %v1340
    %2278 = vmatprep.subr.bf16.mxu0 %v1353
    %2279 = vmatpush1.bf16.msra.mxu0 %v1352
    %2280 = vmatprep.subr.bf16.mxu0 %v1365
    %2281 = vmatpush1.bf16.msra.mxu0 %v1364
    %2282 = vmatprep.subr.bf16.mxu0 %v1377
    %2283 = vmatpush1.bf16.msra.mxu0 %v1376
    %2284 = vmatprep.subr.bf16.mxu0 %v1389
    %2285 = vmatpush1.bf16.msra.mxu0 %v1388
    %2286 = vmatprep.subr.bf16.mxu0 %v1401
    %2287 = vmatpush1.bf16.msra.mxu0 %v1400
    %2288 = vmatprep.subr.bf16.mxu0 %v1413
    %2289 = vmatpush1.bf16.msra.mxu0 %v1412
    %2290 = vmatprep.subr.bf16.mxu0 %v1425
    %2291 = vmatpush1.bf16.msra.mxu0 %v1424
    %2292 = vmatprep.subr.bf16.mxu0 %v1437
    %2293 = vmatpush1.bf16.msra.mxu0 %v1436
    %2294 = vmatprep.subr.bf16.mxu0 %v1449
    %2295 = vmatpush1.bf16.msra.mxu0 %v1448
    %2296 = vmatprep.mubr.bf16.mxu0 %v389
    %2297 = vmatmul.mubr.bf16.gmra.mrb[0].mxu0 %v388
    %v2298 = vpop.f32.mrb[0].mxu0
    %v2299 = vadd.f32 0.0, %v2298
    %v2300 = vpop.f32.mrb[0].mxu0
    %v2301 = vadd.f32 0.0, %v2300
    %v2302 = vpop.f32.mrb[0].mxu0
    %v2303 = vadd.f32 0.0, %v2302
    %v2304 = vpop.f32.mrb[0].mxu0
    %v2305 = vadd.f32 0.0, %v2304
    %2306 = vdwg.mxu0
    %2307 = vmatprep.subr.bf16.mxu0 %v1461
    %2308 = vmatpush1.bf16.msra.mxu0 %v1460
    %2309 = vmatprep.subr.bf16.mxu0 %v1473
    %2310 = vmatpush1.bf16.msra.mxu0 %v1472
    %2311 = vmatprep.subr.bf16.mxu0 %v1485
    %2312 = vmatpush1.bf16.msra.mxu0 %v1484
    %2313 = vmatprep.subr.bf16.mxu0 %v1497
    %2314 = vmatpush1.bf16.msra.mxu0 %v1496
    %2315 = vmatprep.subr.bf16.mxu0 %v1509
    %2316 = vmatpush1.bf16.msra.mxu0 %v1508
    %2317 = vmatprep.subr.bf16.mxu0 %v1521
    %2318 = vmatpush1.bf16.msra.mxu0 %v1520
    %2319 = vmatprep.subr.bf16.mxu0 %v1533
    %2320 = vmatpush1.bf16.msra.mxu0 %v1532
    %2321 = vmatprep.subr.bf16.mxu0 %v1545
    %2322 = vmatpush1.bf16.msra.mxu0 %v1544
    %2323 = vmatprep.subr.bf16.mxu0 0
    %2324 = vmatpush1.bf16.msra.mxu0 0
    %2325 = vmatprep.subr.bf16.mxu0 0
    %2326 = vmatpush1.bf16.msra.mxu0 0
    %2327 = vmatprep.subr.bf16.mxu0 0
    %2328 = vmatpush1.bf16.msra.mxu0 0
    %2329 = vmatprep.subr.bf16.mxu0 0
    %2330 = vmatpush1.bf16.msra.mxu0 0
    %2331 = vmatprep.subr.bf16.mxu0 0
    %2332 = vmatpush1.bf16.msra.mxu0 0
    %2333 = vmatprep.subr.bf16.mxu0 0
    %2334 = vmatpush1.bf16.msra.mxu0 0
    %2335 = vmatprep.subr.bf16.mxu0 0
    %2336 = vmatpush1.bf16.msra.mxu0 0
    %2337 = vmatprep.subr.bf16.mxu0 0
    %2338 = vmatpush1.bf16.msra.mxu0 0
    %2339 = vmatprep.mubr.bf16.mxu0 0
    %2340 = vmatmul.mubr.bf16.gmra.mrb[0].mxu0 %v390
    %v2341 = vpop.f32.mrb[0].mxu0
    %v2342 = vadd.f32 %v2299, %v2341
    %v2343 = vpop.f32.mrb[0].mxu0
    %v2344 = vadd.f32 %v2301, %v2343
    %v2345 = vpop.f32.mrb[0].mxu0
    %v2346 = vadd.f32 %v2303, %v2345
    %v2347 = vpop.f32.mrb[0].mxu0
    %v2348 = vadd.f32 %v2305, %v2347
    %2349 = vdwg.mxu0
    %v2352 = vrot.slane %v1914, 1
    %v2353 = vrot.slane %v1918, 1
    %v2356 = vadd.f32 %v1912, %v2352
    %v2357 = vadd.f32 %v1916, %v2353
    %v2360 = vrot.slane %v1998, 2
    %v2361 = vrot.slane %v2002, 2
    %v2364 = vadd.f32 %v2356, %v2360
    %v2365 = vadd.f32 %v2357, %v2361
    %vm2366 = vcmask 1045504
    %v2367 = vsel %vm2366, %v2364, -inf
    %v2368 = vrot.slane %v2367, 4
    %v2369 = vmax.f32 %v2367, %v2368
    %v2370 = vrot.slane %v2369, 2
    %v2371 = vmax.f32 %v2369, %v2370
    %v2372 = vrot.slane %v2371, 1
    %v2373 = vmax.f32 %v2371, %v2372
    %v2374 = vsel %vm2366, %v2365, -inf
    %v2375 = vrot.slane %v2374, 4
    %v2376 = vmax.f32 %v2374, %v2375
    %v2377 = vrot.slane %v2376, 2
    %v2378 = vmax.f32 %v2376, %v2377
    %v2379 = vrot.slane %v2378, 1
    %v2380 = vmax.f32 %v2378, %v2379
    %v2383 = vrot.slane %v2084, 1
    %v2384 = vrot.slane %v2088, 1
    %v2387 = vadd.f32 %v2000, %v2383
    %v2388 = vadd.f32 %v2004, %v2384
    %v2391 = vrot.slane %v2086, 2
    %v2392 = vrot.slane %v2090, 2
    %v2395 = vadd.f32 %v2387, %v2391
    %v2396 = vadd.f32 %v2388, %v2392
    %v2399 = vrot.slane %v2170, 3
    %v2400 = vrot.slane %v2174, 3
    %v2403 = vadd.f32 %v2395, %v2399
    %v2404 = vadd.f32 %v2396, %v2400
    %vm2405 = vcmask 1044480
    %v2406 = vsel %vm2405, %v2403, -inf
    %v2407 = vrot.slane %v2406, 4
    %v2408 = vmax.f32 %v2406, %v2407
    %v2409 = vrot.slane %v2408, 2
    %v2410 = vmax.f32 %v2408, %v2409
    %v2411 = vrot.slane %v2410, 1
    %v2412 = vmax.f32 %v2410, %v2411
    %v2413 = vsel %vm2405, %v2404, -inf
    %v2414 = vrot.slane %v2413, 4
    %v2415 = vmax.f32 %v2413, %v2414
    %v2416 = vrot.slane %v2415, 2
    %v2417 = vmax.f32 %v2415, %v2416
    %v2418 = vrot.slane %v2417, 1
    %v2419 = vmax.f32 %v2417, %v2418
    %v2422 = vrot.slane %v2256, 1
    %v2423 = vrot.slane %v2260, 1
    %v2426 = vadd.f32 %v2172, %v2422
    %v2427 = vadd.f32 %v2176, %v2423
    %v2430 = vrot.slane %v2258, 2
    %v2431 = vrot.slane %v2262, 2
    %v2434 = vadd.f32 %v2426, %v2430
    %v2435 = vadd.f32 %v2427, %v2431
    %v2438 = vrot.slane %v2342, 3
    %v2439 = vrot.slane %v2346, 3
    %v2442 = vadd.f32 %v2434, %v2438
    %v2443 = vadd.f32 %v2435, %v2439
    %v2446 = vrot.slane %v2344, 4
    %v2447 = vrot.slane %v2348, 4
    %v2450 = vadd.f32 %v2442, %v2446
    %v2451 = vadd.f32 %v2443, %v2447
    %vm2452 = vcmask 1043456
    %v2453 = vsel %vm2452, %v2450, -inf
    %v2454 = vrot.slane %v2453, 4
    %v2455 = vmax.f32 %v2453, %v2454
    %v2456 = vrot.slane %v2455, 2
    %v2457 = vmax.f32 %v2455, %v2456
    %v2458 = vrot.slane %v2457, 1
    %v2459 = vmax.f32 %v2457, %v2458
    %v2460 = vsel %vm2452, %v2451, -inf
    %v2461 = vrot.slane %v2460, 4
    %v2462 = vmax.f32 %v2460, %v2461
    %v2463 = vrot.slane %v2462, 2
    %v2464 = vmax.f32 %v2462, %v2463
    %v2465 = vrot.slane %v2464, 1
    %v2466 = vmax.f32 %v2464, %v2465
    %vm2469 = vcmask 1041409
    %v2470 = vsel %vm2469, %v2380, %v2373
    %v2474 = vsel %vm2469, %v2419, %v2412
    %v2478 = vsel %vm2469, %v2466, %v2459
    %v2480 = vld [vmem:[#allocation7] sm:$0x7]
    %v2482 = vlaneseq
    %v2483 = vshrl.u32 %v2482, 7
    %v2484 = vsub.s32 0, %v2483
    %v2485 = vrot.slane %v2480, %v2484
    %v2486 = vlaneseq
    %v2487 = vshrl.u32 %v2486, 7
    %v2488 = vsub.s32 1, %v2487
    %v2489 = vrot.slane %v2480, %v2488
    %v2490 = vlaneseq
    %v2491 = vshrl.u32 %v2490, 7
    %v2492 = vsub.s32 2, %v2491
    %v2493 = vrot.slane %v2480, %v2492
    %v2497 = vadd.f32 %v2470, %v2485
    %v2498 = vadd.f32 %v2474, %v2489
    %v2499 = vadd.f32 %v2478, %v2493
    %v2500 = vmax.f32 %v2497, 0.0
    %v2501 = vmax.f32 %v2498, 0.0
    %v2502 = vmax.f32 %v2499, 0.0
    %v2503 = vld [vmem:[#allocation8] sm:$0xff]
    %v2504 = vld [vmem:[#allocation8 + $0x8] sm:$0xff]
    %v2505 = vld [vmem:[#allocation8 + $0x10] sm:$0xff]
    %v2506 = vld [vmem:[#allocation8 + $0x18] sm:$0xff]
    %v2507 = vld [vmem:[#allocation8 + $0x20] sm:$0xff]
    %v2508 = vld [vmem:[#allocation8 + $0x28] sm:$0xff]
    %v2509 = vld [vmem:[#allocation8 + $0x30] sm:$0xff]
    %v2510 = vld [vmem:[#allocation8 + $0x38] sm:$0xff]
    %v2511 = vld [vmem:[#allocation8 + $0x40] sm:$0xff]
    %v2512 = vld [vmem:[#allocation8 + $0x48] sm:$0xff]
    %v2513 = vld [vmem:[#allocation8 + $0x50] sm:$0xff]
    %v2514 = vld [vmem:[#allocation8 + $0x58] sm:$0xff]
    %v2515 = vld [vmem:[#allocation8 + $0x60] sm:$0xff]
    %v2516 = vld [vmem:[#allocation8 + $0x68] sm:$0xff]
    %v2517 = vld [vmem:[#allocation8 + $0x70] sm:$0xff]
    %v2518 = vld [vmem:[#allocation8 + $0x78] sm:$0xff]
    %v2519 = vld [vmem:[#allocation8 + $0x80] sm:$0xff]
    %v2520 = vld [vmem:[#allocation8 + $0x88] sm:$0xff]
    %v2521 = vld [vmem:[#allocation8 + $0x90] sm:$0xff]
    %v2522 = vld [vmem:[#allocation8 + $0x98] sm:$0xff]
    %v2523 = vld [vmem:[#allocation8 + $0xa0] sm:$0xff]
    %v2524 = vld [vmem:[#allocation8 + $0xa8] sm:$0xff]
    %v2525 = vld [vmem:[#allocation8 + $0xb0] sm:$0xff]
    %v2526 = vld [vmem:[#allocation8 + $0xb8] sm:$0xff]
    %v2527 = vld [vmem:[#allocation8 + $0xc0] sm:$0xff]
    %v2528 = vld [vmem:[#allocation8 + $0xc8] sm:$0xff]
    %v2529 = vld [vmem:[#allocation8 + $0xd0] sm:$0xff]
    %v2530 = vld [vmem:[#allocation8 + $0xd8] sm:$0xff]
    %v2531 = vld [vmem:[#allocation8 + $0xe0] sm:$0xff]
    %v2532 = vld [vmem:[#allocation8 + $0xe8] sm:$0xff]
    %v2533 = vld [vmem:[#allocation8 + $0xf0] sm:$0xff]
    %v2534 = vld [vmem:[#allocation8 + $0xf8] sm:$0xff]
    %v2535 = vld [vmem:[#allocation8 + $0x100] sm:$0xff]
    %v2536 = vld [vmem:[#allocation8 + $0x108] sm:$0xff]
    %v2537 = vld [vmem:[#allocation8 + $0x110] sm:$0xff]
    %v2538 = vld [vmem:[#allocation8 + $0x118] sm:$0xff]
    %v2539 = vld [vmem:[#allocation8 + $0x120] sm:$0xff]
    %v2540 = vld [vmem:[#allocation8 + $0x128] sm:$0xff]
    %v2541 = vld [vmem:[#allocation8 + $0x130] sm:$0xff]
    %v2542 = vld [vmem:[#allocation8 + $0x138] sm:$0xff]
    %v2543 = vld [vmem:[#allocation8 + $0x140] sm:$0xff]
    %v2544 = vld [vmem:[#allocation8 + $0x148] sm:$0xff]
    %v2545 = vld [vmem:[#allocation8 + $0x150] sm:$0xff]
    %v2546 = vld [vmem:[#allocation8 + $0x158] sm:$0xff]
    %v2547 = vld [vmem:[#allocation8 + $0x160] sm:$0xff]
    %v2548 = vld [vmem:[#allocation8 + $0x168] sm:$0xff]
    %v2549 = vld [vmem:[#allocation8 + $0x170] sm:$0xff]
    %v2550 = vld [vmem:[#allocation8 + $0x178] sm:$0xff]
    %v2551 = vld [vmem:[#allocation10] sm:$0x1]
    %v2553 = vlaneseq
    %v2554 = vshrl.u32 %v2553, 7
    %v2555 = vsub.s32 0, %v2554
    %v2556 = vrot.slane %v2551, %v2555
    %2558 = vmatprep.subr.mxu0 0.0
    %2559 = vmatpush1.msra.mxu0 %v2503
    %2560 = vmatprep.subr.mxu0 0.0
    %2561 = vmatpush1.msra.mxu0 %v2504
    %2562 = vmatprep.subr.mxu0 0.0
    %2563 = vmatpush1.msra.mxu0 %v2505
    %2564 = vmatprep.subr.mxu0 0.0
    %2565 = vmatpush1.msra.mxu0 %v2506
    %2566 = vmatprep.subr.mxu0 0.0
    %2567 = vmatpush1.msra.mxu0 %v2507
    %2568 = vmatprep.subr.mxu0 0.0
    %2569 = vmatpush1.msra.mxu0 %v2508
    %2570 = vmatprep.subr.mxu0 0.0
    %2571 = vmatpush1.msra.mxu0 %v2509
    %2572 = vmatprep.subr.mxu0 0.0
    %2573 = vmatpush1.msra.mxu0 %v2510
    %2574 = vmatprep.subr.mxu0 0.0
    %2575 = vmatpush1.msra.mxu0 %v2511
    %2576 = vmatprep.subr.mxu0 0.0
    %2577 = vmatpush1.msra.mxu0 %v2512
    %2578 = vmatprep.subr.mxu0 0.0
    %2579 = vmatpush1.msra.mxu0 %v2513
    %2580 = vmatprep.subr.mxu0 0.0
    %2581 = vmatpush1.msra.mxu0 %v2514
    %2582 = vmatprep.subr.mxu0 0.0
    %2583 = vmatpush1.msra.mxu0 %v2515
    %2584 = vmatprep.subr.mxu0 0.0
    %2585 = vmatpush1.msra.mxu0 %v2516
    %2586 = vmatprep.subr.mxu0 0.0
    %2587 = vmatpush1.msra.mxu0 %v2517
    %2588 = vmatprep.subr.mxu0 0.0
    %2589 = vmatpush1.msra.mxu0 %v2518
    %2590 = vmatprep.subr.mxu0 0.0
    %2591 = vmatpush1.msra.mxu0 %v2519
    %2592 = vmatprep.subr.mxu0 0.0
    %2593 = vmatpush1.msra.mxu0 %v2520
    %2594 = vmatprep.subr.mxu0 0.0
    %2595 = vmatpush1.msra.mxu0 %v2521
    %2596 = vmatprep.subr.mxu0 0.0
    %2597 = vmatpush1.msra.mxu0 %v2522
    %2598 = vmatprep.subr.mxu0 0.0
    %2599 = vmatpush1.msra.mxu0 %v2523
    %2600 = vmatprep.subr.mxu0 0.0
    %2601 = vmatpush1.msra.mxu0 %v2524
    %2602 = vmatprep.subr.mxu0 0.0
    %2603 = vmatpush1.msra.mxu0 %v2525
    %2604 = vmatprep.subr.mxu0 0.0
    %2605 = vmatpush1.msra.mxu0 %v2526
    %2606 = vmatprep.subr.mxu0 0.0
    %2607 = vmatpush1.msra.mxu0 %v2527
    %2608 = vmatprep.subr.mxu0 0.0
    %2609 = vmatpush1.msra.mxu0 %v2528
    %2610 = vmatprep.subr.mxu0 0.0
    %2611 = vmatpush1.msra.mxu0 %v2529
    %2612 = vmatprep.subr.mxu0 0.0
    %2613 = vmatpush1.msra.mxu0 %v2530
    %2614 = vmatprep.subr.mxu0 0.0
    %2615 = vmatpush1.msra.mxu0 %v2531
    %2616 = vmatprep.subr.mxu0 0.0
    %2617 = vmatpush1.msra.mxu0 %v2532
    %2618 = vmatprep.subr.mxu0 0.0
    %2619 = vmatpush1.msra.mxu0 %v2533
    %2620 = vmatprep.subr.mxu0 0.0
    %2621 = vmatpush1.msra.mxu0 %v2534
    %2622 = vmatprep.mubr.f32.mxu0 %v2501
    %2623 = vmatmul.mubr.f32.gmra.mrb[0].mxu0 %v2500
    %v2624 = vpop.f32.mrb[0].mxu0
    %v2625 = vadd.f32 %v2556, %v2624
    %v2626 = vpop.f32.mrb[0].mxu0
    %2627 = vdwg.mxu0
    %2628 = vmatprep.subr.mxu0 0.0
    %2629 = vmatpush1.msra.mxu0 %v2535
    %2630 = vmatprep.subr.mxu0 0.0
    %2631 = vmatpush1.msra.mxu0 %v2536
    %2632 = vmatprep.subr.mxu0 0.0
    %2633 = vmatpush1.msra.mxu0 %v2537
    %2634 = vmatprep.subr.mxu0 0.0
    %2635 = vmatpush1.msra.mxu0 %v2538
    %2636 = vmatprep.subr.mxu0 0.0
    %2637 = vmatpush1.msra.mxu0 %v2539
    %2638 = vmatprep.subr.mxu0 0.0
    %2639 = vmatpush1.msra.mxu0 %v2540
    %2640 = vmatprep.subr.mxu0 0.0
    %2641 = vmatpush1.msra.mxu0 %v2541
    %2642 = vmatprep.subr.mxu0 0.0
    %2643 = vmatpush1.msra.mxu0 %v2542
    %2644 = vmatprep.subr.mxu0 0.0
    %2645 = vmatpush1.msra.mxu0 %v2543
    %2646 = vmatprep.subr.mxu0 0.0
    %2647 = vmatpush1.msra.mxu0 %v2544
    %2648 = vmatprep.subr.mxu0 0.0
    %2649 = vmatpush1.msra.mxu0 %v2545
    %2650 = vmatprep.subr.mxu0 0.0
    %2651 = vmatpush1.msra.mxu0 %v2546
    %2652 = vmatprep.subr.mxu0 0.0
    %2653 = vmatpush1.msra.mxu0 %v2547
    %2654 = vmatprep.subr.mxu0 0.0
    %2655 = vmatpush1.msra.mxu0 %v2548
    %2656 = vmatprep.subr.mxu0 0.0
    %2657 = vmatpush1.msra.mxu0 %v2549
    %2658 = vmatprep.subr.mxu0 0.0
    %2659 = vmatpush1.msra.mxu0 %v2550
    %2660 = vmatprep.subr.mxu0 0.0
    %2661 = vmatpush1.msra.mxu0 0.0
    %2662 = vmatprep.subr.mxu0 0.0
    %2663 = vmatpush1.msra.mxu0 0.0
    %2664 = vmatprep.subr.mxu0 0.0
    %2665 = vmatpush1.msra.mxu0 0.0
    %2666 = vmatprep.subr.mxu0 0.0
    %2667 = vmatpush1.msra.mxu0 0.0
    %2668 = vmatprep.subr.mxu0 0.0
    %2669 = vmatpush1.msra.mxu0 0.0
    %2670 = vmatprep.subr.mxu0 0.0
    %2671 = vmatpush1.msra.mxu0 0.0
    %2672 = vmatprep.subr.mxu0 0.0
    %2673 = vmatpush1.msra.mxu0 0.0
    %2674 = vmatprep.subr.mxu0 0.0
    %2675 = vmatpush1.msra.mxu0 0.0
    %2676 = vmatprep.subr.mxu0 0.0
    %2677 = vmatpush1.msra.mxu0 0.0
    %2678 = vmatprep.subr.mxu0 0.0
    %2679 = vmatpush1.msra.mxu0 0.0
    %2680 = vmatprep.subr.mxu0 0.0
    %2681 = vmatpush1.msra.mxu0 0.0
    %2682 = vmatprep.subr.mxu0 0.0
    %2683 = vmatpush1.msra.mxu0 0.0
    %2684 = vmatprep.subr.mxu0 0.0
    %2685 = vmatpush1.msra.mxu0 0.0
    %2686 = vmatprep.subr.mxu0 0.0
    %2687 = vmatpush1.msra.mxu0 0.0
    %2688 = vmatprep.subr.mxu0 0.0
    %2689 = vmatpush1.msra.mxu0 0.0
    %2690 = vmatprep.subr.mxu0 0.0
    %2691 = vmatpush1.msra.mxu0 0.0
    %2692 = vmatprep.mubr.f32.mxu0 0.0
    %2693 = vmatmul.mubr.f32.gmra.mrb[0].mxu0 %v2502
    %v2694 = vpop.f32.mrb[0].mxu0
    %v2695 = vadd.f32 %v2625, %v2694
    %v2696 = vpop.f32.mrb[0].mxu0
    %2697 = vdwg.mxu0
    %v2698 = vlaneseq
    %v2699 = vand.u32 %v2698, 127
    %vm2700 = vcmp.lt.s32.totalorder %v2699, 2
    %v2701 = vsel %vm2700, %v2695, -1e+30
    %vm2702 = vcmask 1041408
    %v2703 = vsel %vm2702, %v2701, -inf
    %2704 = vmax.xlane.f32.xlu0 %v2703
    %v2705 = vpop.xlane.xlu0 %2704
    %v2706 = vsub.f32 %v2701, %v2705
    %v2707 = vmul.f32 %v2706, 1.442695
    %v2708 = vpow.pop %v2707
    %v2709 = vsel %vm2702, %v2708, 0.0
    %2710 = vadd.xlane.f32.xlu0 %v2709
    %v2711 = vpop.xlane.xlu0 %2710
    %v2712 = vrcp.pop %v2711
    %v2713 = vmul.f32 %v2708, %v2712
    %2714 = vst [vmem:[#allocation11] sm:$0x3] %v2713
    // Predicated region
    $region42: #{tpu_custom_call.1} parent=1 // pred_check
      _
    $region43: #{tpu_custom_call.1} parent=1 // pred_check_branch
      %2716 = sbr.rel (0) target = $region45
    $region44: #{tpu_custom_call.1} parent=1 // pred_region
      %s2718 = ssub.s32 32, 32
      %2719 = vsyncadd [#allocation4], %s2718
      %s2721 = sshll.u32 [#allocation11], 4
      %s2722 = int_to_ptr.vmem [resolvable:$true] %s2721
      %2724 = dma.vmem_to_hbm [thread:$0]  %s2722, 32, %s5, [#allocation4]
    $region45: #{tpu_custom_call.1} parent=1 // pred_fallthru
      _
    // Predicated region
    $region46: #{tpu_custom_call.1} parent=1 // pred_check
      _
    $region47: #{tpu_custom_call.1} parent=1 // pred_check_branch
      %2726 = sbr.rel (0) target = $region49
    $region48: #{tpu_custom_call.1} parent=1 // pred_region
      %2727 = dma.done [#allocation4], 32
    $region49: #{tpu_custom_call.1} parent=1 // pred_fallthru
      _
    %2728 = vsyncpa [#allocation3], 1
    %2729 = vsyncpa [#allocation6], 1
    %2730 = vsyncpa [#allocation9], 1
    %2731 = vsyncpa [#allocation4], 1

</llo_original>
